<compile_context>
chip_gen: v7x
topology: tpu7x:2x2x1
jax: 0.10.0
libtpu: 0.0.40
codegen_flags: <defaults>
</compile_context>

<pallas_src>
import math
from functools import partial

import jax
import jax.numpy as jnp
from jax.experimental import pallas as pl
from jax.experimental.pallas import tpu as pltpu


def _gelu_exact(x):
    # PyTorch nn.GELU() default = exact erf-based GELU.
    return 0.5 * x * (1.0 + jax.lax.erf(x * (1.0 / math.sqrt(2.0))))


def encoder_kernel(x_ref,
                   wq_ref, bq_ref, wk_ref, bk_ref, wv_ref, bv_ref,
                   wp_ref, bp_ref,
                   g1_ref, be1_ref,
                   w1_ref, bf1_ref, w2_ref, bf2_ref,
                   g2_ref, be2_ref,
                   o_ref,
                   attn_sc,
                   *, n_head, approx_softmax):
    # One grid step processes a tile of BB batch elements: block (BB, T, C).
    BB, T, C = x_ref.shape
    H = n_head
    D = C // H
    R = BB * T
    scale = 1.0 / math.sqrt(D)
    cdt = wq_ref.dtype                       # MXU compute dtype (bf16 or f32)

    x_f32 = x_ref[...].reshape(R, C)         # (R, C) f32 residual stream
    x_c = x_f32.astype(cdt)

    # --- QKV projections: row-filled (R, C) x (C, C) MXU matmuls, f32 acc ---
    q = jnp.dot(x_c, wq_ref[...], preferred_element_type=jnp.float32) + bq_ref[...]
    k = jnp.dot(x_c, wk_ref[...], preferred_element_type=jnp.float32) + bk_ref[...]
    v = jnp.dot(x_c, wv_ref[...], preferred_element_type=jnp.float32) + bv_ref[...]

    # fold 1/sqrt(D) into q before QK^T (cheaper than scaling (T,T) scores)
    q3 = (q * scale).astype(cdt).reshape(BB, T, C)
    k3 = k.astype(cdt).reshape(BB, T, C)
    v3 = v.astype(cdt).reshape(BB, T, C)

    # --- attention: per head, one batched (over BB) dot_general pair.
    #     Head outputs are stored directly into the (BB, T, C) VMEM scratch
    #     (no concatenate, no H simultaneous live head outputs). ---
    for h in range(H):
        lo = h * D
        qh = q3[:, :, lo:lo + D]             # (BB, T, D)
        kh = k3[:, :, lo:lo + D]
        vh = v3[:, :, lo:lo + D]
        att = jnp.einsum('btd,bsd->bts', qh, kh,
                         preferred_element_type=jnp.float32)      # (BB, T, T) f32
        att = att - jnp.max(att, axis=-1, keepdims=True)
        p = jnp.exp(att)
        p = p * pl.reciprocal(jnp.sum(p, axis=-1, keepdims=True),
                              approx=approx_softmax)
        attn_sc[:, :, lo:lo + D] = jnp.einsum(
            'bts,bsd->btd', p.astype(cdt), vh,
            preferred_element_type=jnp.float32)                   # (BB, T, D) f32

    # output projection
    y = jnp.dot(attn_sc[...].reshape(R, C).astype(cdt), wp_ref[...],
                preferred_element_type=jnp.float32) + bp_ref[...]

    # --- residual + LayerNorm 1 (single-pass stats) ---
    r1 = y + x_f32
    mu1 = jnp.mean(r1, axis=-1, keepdims=True)
    var1 = jnp.mean(r1 * r1, axis=-1, keepdims=True) - mu1 * mu1
    x1 = (r1 - mu1) * jax.lax.rsqrt(var1 + 1e-5) * g1_ref[...] + be1_ref[...]

    # --- FFN: Linear(C, 4C) -> GELU -> Linear(4C, C) ---
    h1 = jnp.dot(x1.astype(cdt), w1_ref[...],
                 preferred_element_type=jnp.float32) + bf1_ref[...]
    h1 = _gelu_exact(h1)
    ff = jnp.dot(h1.astype(cdt), w2_ref[...],
                 preferred_element_type=jnp.float32) + bf2_ref[...]

    # --- residual + LayerNorm 2 (single-pass stats) ---
    r2 = ff + x1
    mu2 = jnp.mean(r2, axis=-1, keepdims=True)
    var2 = jnp.mean(r2 * r2, axis=-1, keepdims=True) - mu2 * mu2
    out = (r2 - mu2) * jax.lax.rsqrt(var2 + 1e-5) * g2_ref[...] + be2_ref[...]

    o_ref[...] = out.reshape(BB, T, C)


def _pick_batch_tile(B, T, target_rows=256):
    """Smallest divisor of B such that BB*T >= target_rows, else B."""
    for bb in range(1, B + 1):
        if B % bb == 0 and bb * T >= target_rows:
            return bb
    return B


def encoder_forward(x, params, n_head, *,
                    compute_dtype=jnp.bfloat16,
                    approx_softmax=True,
                    batch_tile=None):
    B, T, C = x.shape
    assert C % n_head == 0

    BB = batch_tile if batch_tile is not None else _pick_batch_tile(B, T)
    assert B % BB == 0

    matmul_names = ("wq", "wk", "wv", "wp", "w1", "w2")
    param_order = ["wq", "bq", "wk", "bk", "wv", "bv", "wp", "bp",
                   "g1", "be1", "w1", "bf1", "w2", "bf2", "g2", "be2"]

    prepared = {}
    for n in param_order:
        p = params[n]
        prepared[n] = p.astype(compute_dtype) if n in matmul_names \
            else p.astype(jnp.float32)

    args = [x.astype(jnp.float32)] + [prepared[n] for n in param_order]

    in_specs = [pl.BlockSpec((BB, T, C), lambda b: (b, 0, 0))]
    for n in param_order:
        p = prepared[n]
        in_specs.append(pl.BlockSpec(p.shape, lambda b, _nd=p.ndim: (0,) * _nd))
    out_spec = pl.BlockSpec((BB, T, C), lambda b: (b, 0, 0))

    # --- scoped VMEM budget: resident (double-buffered) weights + act tiles ---
    weight_bytes = sum(int(prepared[n].size) * prepared[n].dtype.itemsize
                       for n in param_order)
    act_tile_bytes = BB * T * C * 4
    est_vmem = (2 * weight_bytes            # double-buffered param blocks
                + 16 * act_tile_bytes       # x/out tiles, scratch, intermediates
                + 2 * BB * T * 4 * C * 4)   # FFN hidden slab in f32
    vmem_limit = int(min(64 * 1024 * 1024, max(32 * 1024 * 1024, est_vmem)))

    # --- advisory cost estimate for the surrounding XLA schedule ---
    H = n_head
    flops = 24 * B * T * C * C + 4 * B * T * T * C
    transcendentals = B * H * T * T + 4 * B * T * C + 2 * B * T
    bytes_accessed = weight_bytes + 2 * B * T * C * 4
    cost = pl.CostEstimate(flops=flops, transcendentals=transcendentals,
                           bytes_accessed=bytes_accessed)

    kern = partial(encoder_kernel, n_head=n_head, approx_softmax=approx_softmax)

    return pl.pallas_call(
        kern,
        out_shape=jax.ShapeDtypeStruct((B, T, C), jnp.float32),
        grid_spec=pltpu.PrefetchScalarGridSpec(
            num_scalar_prefetch=0,
            grid=(B // BB,),
            in_specs=in_specs,
            out_specs=out_spec,
            scratch_shapes=[pltpu.VMEM((BB, T, C), jnp.float32)],
        ),
        compiler_params=pltpu.CompilerParams(
            dimension_semantics=("parallel",),
            vmem_limit_bytes=vmem_limit),
        cost_estimate=cost,
    )(*args)


# ----------------- pure-JAX reference (for correctness check) -----------------
def encoder_reference(x, params, n_head):
    B, T, C = x.shape
    D = C // n_head
    scale = 1.0 / math.sqrt(D)

    def lin(a, w, b):
        return a @ w + b[0]

    q = lin(x, params["wq"], params["bq"]).reshape(B, T, n_head, D).transpose(0, 2, 1, 3)
    k = lin(x, params["wk"], params["bk"]).reshape(B, T, n_head, D).transpose(0, 2, 1, 3)
    v = lin(x, params["wv"], params["bv"]).reshape(B, T, n_head, D).transpose(0, 2, 1, 3)
    att = jnp.einsum("bhtd,bhsd->bhts", q, k) * scale
    att = jax.nn.softmax(att, axis=-1)
    y = jnp.einsum("bhts,bhsd->bhtd", att, v).transpose(0, 2, 1, 3).reshape(B, T, C)
    y = lin(y, params["wp"], params["bp"])

    def ln(a, g, b):
        mu = jnp.mean(a, axis=-1, keepdims=True)
        var = jnp.mean((a - mu) ** 2, axis=-1, keepdims=True)
        return (a - mu) * jax.lax.rsqrt(var + 1e-5) * g[0] + b[0]

    x1 = ln(y + x, params["g1"], params["be1"])
    h = _gelu_exact(lin(x1, params["w1"], params["bf1"]))
    ff = lin(h, params["w2"], params["bf2"])
    return ln(ff + x1, params["g2"], params["be2"])


def init_params(key, C):
    ks = jax.random.split(key, 12)

    def linear(kw, kb, fan_in, fan_out):
        bound = 1.0 / math.sqrt(fan_in)
        w = jax.random.uniform(kw, (fan_in, fan_out), jnp.float32, -bound, bound)
        b = jax.random.uniform(kb, (1, fan_out), jnp.float32, -bound, bound)
        return w, b

    p = {}
    p["wq"], p["bq"] = linear(ks[0], ks[1], C, C)
    p["wk"], p["bk"] = linear(ks[2], ks[3], C, C)
    p["wv"], p["bv"] = linear(ks[4], ks[5], C, C)
    p["wp"], p["bp"] = linear(ks[6], ks[7], C, C)
    p["w1"], p["bf1"] = linear(ks[8], ks[9], C, 4 * C)
    p["w2"], p["bf2"] = linear(ks[10], ks[11], 4 * C, C)
    p["g1"] = jnp.ones((1, C), jnp.float32)
    p["be1"] = jnp.zeros((1, C), jnp.float32)
    p["g2"] = jnp.ones((1, C), jnp.float32)
    p["be2"] = jnp.zeros((1, C), jnp.float32)
    return p


if __name__ == "__main__":
    B, T, C, H = 2, 8, 32, 4   # batch, seq (block_size), n_embd, n_head

    key = jax.random.PRNGKey(0)
    k_x, k_p = jax.random.split(key)
    x = jax.random.normal(k_x, (B, T, C), dtype=jnp.float32)
    params = init_params(k_p, C)

    ref = encoder_reference(x, params, H)

    # Exact path (f32 MXU, exact reciprocal): validates kernel structure.
    out_exact = jax.block_until_ready(
        encoder_forward(x, params, H,
                        compute_dtype=jnp.float32, approx_softmax=False))
    assert out_exact.shape == (B, T, C)
    assert jnp.allclose(out_exact, ref, atol=1e-4, rtol=1e-4), \
        "exact-path mismatch vs reference"

    # Fast path (bf16 MXU + EUP approx reciprocal): production configuration.
    out_fast = jax.block_until_ready(encoder_forward(x, params, H))
    assert out_fast.shape == (B, T, C)
    assert jnp.allclose(out_fast, ref, atol=5e-2, rtol=5e-2), \
        "bf16 fast-path mismatch vs reference"

    print("KERNEL_OK")
</pallas_src>

<mosaic_0001>
module attributes {stable_mosaic.version = 11 : i64} {
  func.func @encoder_kernel(%arg0: i32, %arg1: memref<2x8x32xf32, #tpu.memory_space<vmem>>, %arg2: memref<32x32xf32, #tpu.memory_space<vmem>>, %arg3: memref<1x32xf32, #tpu.memory_space<vmem>>, %arg4: memref<32x32xf32, #tpu.memory_space<vmem>>, %arg5: memref<1x32xf32, #tpu.memory_space<vmem>>, %arg6: memref<32x32xf32, #tpu.memory_space<vmem>>, %arg7: memref<1x32xf32, #tpu.memory_space<vmem>>, %arg8: memref<32x32xf32, #tpu.memory_space<vmem>>, %arg9: memref<1x32xf32, #tpu.memory_space<vmem>>, %arg10: memref<1x32xf32, #tpu.memory_space<vmem>>, %arg11: memref<1x32xf32, #tpu.memory_space<vmem>>, %arg12: memref<32x128xf32, #tpu.memory_space<vmem>>, %arg13: memref<1x128xf32, #tpu.memory_space<vmem>>, %arg14: memref<128x32xf32, #tpu.memory_space<vmem>>, %arg15: memref<1x32xf32, #tpu.memory_space<vmem>>, %arg16: memref<1x32xf32, #tpu.memory_space<vmem>>, %arg17: memref<1x32xf32, #tpu.memory_space<vmem>>, %arg18: memref<2x8x32xf32, #tpu.memory_space<vmem>>, %arg19: memref<2x8x32xf32, #tpu.memory_space<vmem>>) attributes {dimension_semantics = [#tpu.dimension_semantics<parallel>], iteration_bounds = array<i64: 1>, scalar_prefetch = 0 : i64, scratch_operands = 1 : i64, tpu.core_type = #tpu.core_type<tc>, window_params = [{transform_indices = @transform_0, window_bounds = array<i64: 2, 8, 32>}, {pipeline_mode = #tpu.pipeline_mode<synchronous>, transform_indices = @transform_1, window_bounds = array<i64: 32, 32>}, {pipeline_mode = #tpu.pipeline_mode<synchronous>, transform_indices = @transform_2, window_bounds = array<i64: 1, 32>}, {pipeline_mode = #tpu.pipeline_mode<synchronous>, transform_indices = @transform_3, window_bounds = array<i64: 32, 32>}, {pipeline_mode = #tpu.pipeline_mode<synchronous>, transform_indices = @transform_4, window_bounds = array<i64: 1, 32>}, {pipeline_mode = #tpu.pipeline_mode<synchronous>, transform_indices = @transform_5, window_bounds = array<i64: 32, 32>}, {pipeline_mode = #tpu.pipeline_mode<synchronous>, transform_indices = @transform_6, window_bounds = array<i64: 1, 32>}, {pipeline_mode = #tpu.pipeline_mode<synchronous>, transform_indices = @transform_7, window_bounds = array<i64: 32, 32>}, {pipeline_mode = #tpu.pipeline_mode<synchronous>, transform_indices = @transform_8, window_bounds = array<i64: 1, 32>}, {pipeline_mode = #tpu.pipeline_mode<synchronous>, transform_indices = @transform_9, window_bounds = array<i64: 1, 32>}, {pipeline_mode = #tpu.pipeline_mode<synchronous>, transform_indices = @transform_10, window_bounds = array<i64: 1, 32>}, {pipeline_mode = #tpu.pipeline_mode<synchronous>, transform_indices = @transform_11, window_bounds = array<i64: 32, 128>}, {pipeline_mode = #tpu.pipeline_mode<synchronous>, transform_indices = @transform_12, window_bounds = array<i64: 1, 128>}, {pipeline_mode = #tpu.pipeline_mode<synchronous>, transform_indices = @transform_13, window_bounds = array<i64: 128, 32>}, {pipeline_mode = #tpu.pipeline_mode<synchronous>, transform_indices = @transform_14, window_bounds = array<i64: 1, 32>}, {pipeline_mode = #tpu.pipeline_mode<synchronous>, transform_indices = @transform_15, window_bounds = array<i64: 1, 32>}, {pipeline_mode = #tpu.pipeline_mode<synchronous>, transform_indices = @transform_16, window_bounds = array<i64: 1, 32>}, {transform_indices = @transform_17, window_bounds = array<i64: 2, 8, 32>}]} {
    %c0 = arith.constant 0 : index
    %c0_0 = arith.constant 0 : index
    %c0_1 = arith.constant 0 : index
    %0 = vector.load %arg1[%c0, %c0_0, %c0_1] : memref<2x8x32xf32, #tpu.memory_space<vmem>>, vector<2x8x32xf32>
    %1 = vector.shape_cast %0 : vector<2x8x32xf32> to vector<16x32xf32>
    %c0_2 = arith.constant 0 : index
    %c0_3 = arith.constant 0 : index
    %2 = vector.load %arg2[%c0_2, %c0_3] : memref<32x32xf32, #tpu.memory_space<vmem>>, vector<32x32xf32>
    %cst = arith.constant dense<0.000000e+00> : vector<16x32xf32>
    %3 = tpu.matmul %1, %2, %cst {dimension_numbers = #tpu.dot_dimension_numbers<[1], [0], [0], [1], [0, 0, 1, 1], [], []>} : vector<16x32xf32>, vector<32x32xf32>, vector<16x32xf32> -> vector<16x32xf32>
    %c0_4 = arith.constant 0 : index
    %c0_5 = arith.constant 0 : index
    %4 = vector.load %arg3[%c0_4, %c0_5] : memref<1x32xf32, #tpu.memory_space<vmem>>, vector<1x32xf32>
    %5 = vector.broadcast %4 : vector<1x32xf32> to vector<16x32xf32>
    %6 = arith.addf %3, %5 : vector<16x32xf32>
    %c0_6 = arith.constant 0 : index
    %c0_7 = arith.constant 0 : index
    %7 = vector.load %arg4[%c0_6, %c0_7] : memref<32x32xf32, #tpu.memory_space<vmem>>, vector<32x32xf32>
    %cst_8 = arith.constant dense<0.000000e+00> : vector<16x32xf32>
    %8 = tpu.matmul %1, %7, %cst_8 {dimension_numbers = #tpu.dot_dimension_numbers<[1], [0], [0], [1], [0, 0, 1, 1], [], []>} : vector<16x32xf32>, vector<32x32xf32>, vector<16x32xf32> -> vector<16x32xf32>
    %c0_9 = arith.constant 0 : index
    %c0_10 = arith.constant 0 : index
    %9 = vector.load %arg5[%c0_9, %c0_10] : memref<1x32xf32, #tpu.memory_space<vmem>>, vector<1x32xf32>
    %10 = vector.broadcast %9 : vector<1x32xf32> to vector<16x32xf32>
    %11 = arith.addf %8, %10 : vector<16x32xf32>
    %c0_11 = arith.constant 0 : index
    %c0_12 = arith.constant 0 : index
    %12 = vector.load %arg6[%c0_11, %c0_12] : memref<32x32xf32, #tpu.memory_space<vmem>>, vector<32x32xf32>
    %cst_13 = arith.constant dense<0.000000e+00> : vector<16x32xf32>
    %13 = tpu.matmul %1, %12, %cst_13 {dimension_numbers = #tpu.dot_dimension_numbers<[1], [0], [0], [1], [0, 0, 1, 1], [], []>} : vector<16x32xf32>, vector<32x32xf32>, vector<16x32xf32> -> vector<16x32xf32>
    %c0_14 = arith.constant 0 : index
    %c0_15 = arith.constant 0 : index
    %14 = vector.load %arg7[%c0_14, %c0_15] : memref<1x32xf32, #tpu.memory_space<vmem>>, vector<1x32xf32>
    %15 = vector.broadcast %14 : vector<1x32xf32> to vector<16x32xf32>
    %16 = arith.addf %13, %15 : vector<16x32xf32>
    %cst_16 = arith.constant 0.353553385 : f32
    %17 = vector.broadcast %cst_16 : f32 to vector<16x32xf32>
    %18 = arith.mulf %6, %17 : vector<16x32xf32>
    %19 = vector.shape_cast %18 : vector<16x32xf32> to vector<2x8x32xf32>
    %20 = vector.shape_cast %11 : vector<16x32xf32> to vector<2x8x32xf32>
    %21 = vector.shape_cast %16 : vector<16x32xf32> to vector<2x8x32xf32>
    %22 = vector.extract_strided_slice %19 {offsets = [0, 0, 0], sizes = [2, 8, 8], strides = [1, 1, 1]} : vector<2x8x32xf32> to vector<2x8x8xf32>
    %23 = vector.extract_strided_slice %20 {offsets = [0, 0, 0], sizes = [2, 8, 8], strides = [1, 1, 1]} : vector<2x8x32xf32> to vector<2x8x8xf32>
    %24 = vector.extract_strided_slice %21 {offsets = [0, 0, 0], sizes = [2, 8, 8], strides = [1, 1, 1]} : vector<2x8x32xf32> to vector<2x8x8xf32>
    "tpu.trace_start"() <{level = 10 : i32, message = "btd,bsd->bts"}> : () -> ()
    %cst_17 = arith.constant dense<0.000000e+00> : vector<2x8x8xf32>
    %25 = tpu.matmul %22, %23, %cst_17 {dimension_numbers = #tpu.dot_dimension_numbers<[2], [2], [1], [1], [0, 0, 0, 1, 1, 1], [0], [0]>} : vector<2x8x8xf32>, vector<2x8x8xf32>, vector<2x8x8xf32> -> vector<2x8x8xf32>
    "tpu.trace_stop"() : () -> ()
    %cst_18 = arith.constant dense<0xFF800000> : vector<2x8xf32>
    %26 = vector.multi_reduction <maximumf>, %25, %cst_18 [2] : vector<2x8x8xf32> to vector<2x8xf32>
    %27 = vector.shape_cast %26 : vector<2x8xf32> to vector<2x8x1xf32>
    %28 = vector.broadcast %27 : vector<2x8x1xf32> to vector<2x8x8xf32>
    %29 = arith.subf %25, %28 : vector<2x8x8xf32>
    %30 = math.exp %29 : vector<2x8x8xf32>
    %cst_19 = arith.constant dense<0.000000e+00> : vector<2x8xf32>
    %31 = vector.multi_reduction <add>, %30, %cst_19 [2] : vector<2x8x8xf32> to vector<2x8xf32>
    %32 = vector.shape_cast %31 : vector<2x8xf32> to vector<2x8x1xf32>
    %33 = tpu.reciprocal %32 : vector<2x8x1xf32> -> vector<2x8x1xf32>
    %34 = vector.broadcast %33 : vector<2x8x1xf32> to vector<2x8x8xf32>
    %35 = arith.mulf %30, %34 : vector<2x8x8xf32>
    "tpu.trace_start"() <{level = 10 : i32, message = "bts,bsd->btd"}> : () -> ()
    %cst_20 = arith.constant dense<0.000000e+00> : vector<2x8x8xf32>
    %36 = tpu.matmul %35, %24, %cst_20 {dimension_numbers = #tpu.dot_dimension_numbers<[2], [1], [1], [2], [0, 0, 0, 1, 1, 2], [0], [0]>} : vector<2x8x8xf32>, vector<2x8x8xf32>, vector<2x8x8xf32> -> vector<2x8x8xf32>
    "tpu.trace_stop"() : () -> ()
    %c0_21 = arith.constant 0 : index
    %c0_22 = arith.constant 0 : index
    %c0_23 = arith.constant 0 : index
    %37 = vector.load %arg19[%c0_21, %c0_22, %c0_23] : memref<2x8x32xf32, #tpu.memory_space<vmem>>, vector<2x8x8xf32>
    tpu.vector_store %arg19[%c0_21, %c0_22, %c0_23], %36 {strides = array<i32>} : memref<2x8x32xf32, #tpu.memory_space<vmem>>, vector<2x8x8xf32>,
    %38 = vector.extract_strided_slice %19 {offsets = [0, 0, 8], sizes = [2, 8, 8], strides = [1, 1, 1]} : vector<2x8x32xf32> to vector<2x8x8xf32>
    %39 = vector.extract_strided_slice %20 {offsets = [0, 0, 8], sizes = [2, 8, 8], strides = [1, 1, 1]} : vector<2x8x32xf32> to vector<2x8x8xf32>
    %40 = vector.extract_strided_slice %21 {offsets = [0, 0, 8], sizes = [2, 8, 8], strides = [1, 1, 1]} : vector<2x8x32xf32> to vector<2x8x8xf32>
    "tpu.trace_start"() <{level = 10 : i32, message = "btd,bsd->bts"}> : () -> ()
    %cst_24 = arith.constant dense<0.000000e+00> : vector<2x8x8xf32>
    %41 = tpu.matmul %38, %39, %cst_24 {dimension_numbers = #tpu.dot_dimension_numbers<[2], [2], [1], [1], [0, 0, 0, 1, 1, 1], [0], [0]>} : vector<2x8x8xf32>, vector<2x8x8xf32>, vector<2x8x8xf32> -> vector<2x8x8xf32>
    "tpu.trace_stop"() : () -> ()
    %cst_25 = arith.constant dense<0xFF800000> : vector<2x8xf32>
    %42 = vector.multi_reduction <maximumf>, %41, %cst_25 [2] : vector<2x8x8xf32> to vector<2x8xf32>
    %43 = vector.shape_cast %42 : vector<2x8xf32> to vector<2x8x1xf32>
    %44 = vector.broadcast %43 : vector<2x8x1xf32> to vector<2x8x8xf32>
    %45 = arith.subf %41, %44 : vector<2x8x8xf32>
    %46 = math.exp %45 : vector<2x8x8xf32>
    %cst_26 = arith.constant dense<0.000000e+00> : vector<2x8xf32>
    %47 = vector.multi_reduction <add>, %46, %cst_26 [2] : vector<2x8x8xf32> to vector<2x8xf32>
    %48 = vector.shape_cast %47 : vector<2x8xf32> to vector<2x8x1xf32>
    %49 = tpu.reciprocal %48 : vector<2x8x1xf32> -> vector<2x8x1xf32>
    %50 = vector.broadcast %49 : vector<2x8x1xf32> to vector<2x8x8xf32>
    %51 = arith.mulf %46, %50 : vector<2x8x8xf32>
    "tpu.trace_start"() <{level = 10 : i32, message = "bts,bsd->btd"}> : () -> ()
    %cst_27 = arith.constant dense<0.000000e+00> : vector<2x8x8xf32>
    %52 = tpu.matmul %51, %40, %cst_27 {dimension_numbers = #tpu.dot_dimension_numbers<[2], [1], [1], [2], [0, 0, 0, 1, 1, 2], [0], [0]>} : vector<2x8x8xf32>, vector<2x8x8xf32>, vector<2x8x8xf32> -> vector<2x8x8xf32>
    "tpu.trace_stop"() : () -> ()
    %c0_28 = arith.constant 0 : index
    %c0_29 = arith.constant 0 : index
    %c8 = arith.constant 8 : index
    %53 = vector.load %arg19[%c0_28, %c0_29, %c8] : memref<2x8x32xf32, #tpu.memory_space<vmem>>, vector<2x8x8xf32>
    tpu.vector_store %arg19[%c0_28, %c0_29, %c8], %52 {strides = array<i32>} : memref<2x8x32xf32, #tpu.memory_space<vmem>>, vector<2x8x8xf32>,
    %54 = vector.extract_strided_slice %19 {offsets = [0, 0, 16], sizes = [2, 8, 8], strides = [1, 1, 1]} : vector<2x8x32xf32> to vector<2x8x8xf32>
    %55 = vector.extract_strided_slice %20 {offsets = [0, 0, 16], sizes = [2, 8, 8], strides = [1, 1, 1]} : vector<2x8x32xf32> to vector<2x8x8xf32>
    %56 = vector.extract_strided_slice %21 {offsets = [0, 0, 16], sizes = [2, 8, 8], strides = [1, 1, 1]} : vector<2x8x32xf32> to vector<2x8x8xf32>
    "tpu.trace_start"() <{level = 10 : i32, message = "btd,bsd->bts"}> : () -> ()
    %cst_30 = arith.constant dense<0.000000e+00> : vector<2x8x8xf32>
    %57 = tpu.matmul %54, %55, %cst_30 {dimension_numbers = #tpu.dot_dimension_numbers<[2], [2], [1], [1], [0, 0, 0, 1, 1, 1], [0], [0]>} : vector<2x8x8xf32>, vector<2x8x8xf32>, vector<2x8x8xf32> -> vector<2x8x8xf32>
    "tpu.trace_stop"() : () -> ()
    %cst_31 = arith.constant dense<0xFF800000> : vector<2x8xf32>
    %58 = vector.multi_reduction <maximumf>, %57, %cst_31 [2] : vector<2x8x8xf32> to vector<2x8xf32>
    %59 = vector.shape_cast %58 : vector<2x8xf32> to vector<2x8x1xf32>
    %60 = vector.broadcast %59 : vector<2x8x1xf32> to vector<2x8x8xf32>
    %61 = arith.subf %57, %60 : vector<2x8x8xf32>
    %62 = math.exp %61 : vector<2x8x8xf32>
    %cst_32 = arith.constant dense<0.000000e+00> : vector<2x8xf32>
    %63 = vector.multi_reduction <add>, %62, %cst_32 [2] : vector<2x8x8xf32> to vector<2x8xf32>
    %64 = vector.shape_cast %63 : vector<2x8xf32> to vector<2x8x1xf32>
    %65 = tpu.reciprocal %64 : vector<2x8x1xf32> -> vector<2x8x1xf32>
    %66 = vector.broadcast %65 : vector<2x8x1xf32> to vector<2x8x8xf32>
    %67 = arith.mulf %62, %66 : vector<2x8x8xf32>
    "tpu.trace_start"() <{level = 10 : i32, message = "bts,bsd->btd"}> : () -> ()
    %cst_33 = arith.constant dense<0.000000e+00> : vector<2x8x8xf32>
    %68 = tpu.matmul %67, %56, %cst_33 {dimension_numbers = #tpu.dot_dimension_numbers<[2], [1], [1], [2], [0, 0, 0, 1, 1, 2], [0], [0]>} : vector<2x8x8xf32>, vector<2x8x8xf32>, vector<2x8x8xf32> -> vector<2x8x8xf32>
    "tpu.trace_stop"() : () -> ()
    %c0_34 = arith.constant 0 : index
    %c0_35 = arith.constant 0 : index
    %c16 = arith.constant 16 : index
    %69 = vector.load %arg19[%c0_34, %c0_35, %c16] : memref<2x8x32xf32, #tpu.memory_space<vmem>>, vector<2x8x8xf32>
    tpu.vector_store %arg19[%c0_34, %c0_35, %c16], %68 {strides = array<i32>} : memref<2x8x32xf32, #tpu.memory_space<vmem>>, vector<2x8x8xf32>,
    %70 = vector.extract_strided_slice %19 {offsets = [0, 0, 24], sizes = [2, 8, 8], strides = [1, 1, 1]} : vector<2x8x32xf32> to vector<2x8x8xf32>
    %71 = vector.extract_strided_slice %20 {offsets = [0, 0, 24], sizes = [2, 8, 8], strides = [1, 1, 1]} : vector<2x8x32xf32> to vector<2x8x8xf32>
    %72 = vector.extract_strided_slice %21 {offsets = [0, 0, 24], sizes = [2, 8, 8], strides = [1, 1, 1]} : vector<2x8x32xf32> to vector<2x8x8xf32>
    "tpu.trace_start"() <{level = 10 : i32, message = "btd,bsd->bts"}> : () -> ()
    %cst_36 = arith.constant dense<0.000000e+00> : vector<2x8x8xf32>
    %73 = tpu.matmul %70, %71, %cst_36 {dimension_numbers = #tpu.dot_dimension_numbers<[2], [2], [1], [1], [0, 0, 0, 1, 1, 1], [0], [0]>} : vector<2x8x8xf32>, vector<2x8x8xf32>, vector<2x8x8xf32> -> vector<2x8x8xf32>
    "tpu.trace_stop"() : () -> ()
    %cst_37 = arith.constant dense<0xFF800000> : vector<2x8xf32>
    %74 = vector.multi_reduction <maximumf>, %73, %cst_37 [2] : vector<2x8x8xf32> to vector<2x8xf32>
    %75 = vector.shape_cast %74 : vector<2x8xf32> to vector<2x8x1xf32>
    %76 = vector.broadcast %75 : vector<2x8x1xf32> to vector<2x8x8xf32>
    %77 = arith.subf %73, %76 : vector<2x8x8xf32>
    %78 = math.exp %77 : vector<2x8x8xf32>
    %cst_38 = arith.constant dense<0.000000e+00> : vector<2x8xf32>
    %79 = vector.multi_reduction <add>, %78, %cst_38 [2] : vector<2x8x8xf32> to vector<2x8xf32>
    %80 = vector.shape_cast %79 : vector<2x8xf32> to vector<2x8x1xf32>
    %81 = tpu.reciprocal %80 : vector<2x8x1xf32> -> vector<2x8x1xf32>
    %82 = vector.broadcast %81 : vector<2x8x1xf32> to vector<2x8x8xf32>
    %83 = arith.mulf %78, %82 : vector<2x8x8xf32>
    "tpu.trace_start"() <{level = 10 : i32, message = "bts,bsd->btd"}> : () -> ()
    %cst_39 = arith.constant dense<0.000000e+00> : vector<2x8x8xf32>
    %84 = tpu.matmul %83, %72, %cst_39 {dimension_numbers = #tpu.dot_dimension_numbers<[2], [1], [1], [2], [0, 0, 0, 1, 1, 2], [0], [0]>} : vector<2x8x8xf32>, vector<2x8x8xf32>, vector<2x8x8xf32> -> vector<2x8x8xf32>
    "tpu.trace_stop"() : () -> ()
    %c0_40 = arith.constant 0 : index
    %c0_41 = arith.constant 0 : index
    %c24 = arith.constant 24 : index
    %85 = vector.load %arg19[%c0_40, %c0_41, %c24] : memref<2x8x32xf32, #tpu.memory_space<vmem>>, vector<2x8x8xf32>
    tpu.vector_store %arg19[%c0_40, %c0_41, %c24], %84 {strides = array<i32>} : memref<2x8x32xf32, #tpu.memory_space<vmem>>, vector<2x8x8xf32>,
    %c0_42 = arith.constant 0 : index
    %c0_43 = arith.constant 0 : index
    %c0_44 = arith.constant 0 : index
    %86 = vector.load %arg19[%c0_42, %c0_43, %c0_44] : memref<2x8x32xf32, #tpu.memory_space<vmem>>, vector<2x8x32xf32>
    %87 = vector.shape_cast %86 : vector<2x8x32xf32> to vector<16x32xf32>
    %c0_45 = arith.constant 0 : index
    %c0_46 = arith.constant 0 : index
    %88 = vector.load %arg8[%c0_45, %c0_46] : memref<32x32xf32, #tpu.memory_space<vmem>>, vector<32x32xf32>
    %cst_47 = arith.constant dense<0.000000e+00> : vector<16x32xf32>
    %89 = tpu.matmul %87, %88, %cst_47 {dimension_numbers = #tpu.dot_dimension_numbers<[1], [0], [0], [1], [0, 0, 1, 1], [], []>} : vector<16x32xf32>, vector<32x32xf32>, vector<16x32xf32> -> vector<16x32xf32>
    %c0_48 = arith.constant 0 : index
    %c0_49 = arith.constant 0 : index
    %90 = vector.load %arg9[%c0_48, %c0_49] : memref<1x32xf32, #tpu.memory_space<vmem>>, vector<1x32xf32>
    %91 = vector.broadcast %90 : vector<1x32xf32> to vector<16x32xf32>
    %92 = arith.addf %89, %91 : vector<16x32xf32>
    %93 = arith.addf %92, %1 : vector<16x32xf32>
    %cst_50 = arith.constant dense<0.000000e+00> : vector<16xf32>
    %94 = vector.multi_reduction <add>, %93, %cst_50 [1] : vector<16x32xf32> to vector<16xf32>
    %95 = vector.shape_cast %94 : vector<16xf32> to vector<16x1xf32>
    %cst_51 = arith.constant 3.200000e+01 : f32
    %96 = vector.broadcast %cst_51 : f32 to vector<16x1xf32>
    %97 = arith.divf %95, %96 : vector<16x1xf32>
    %98 = arith.mulf %93, %93 : vector<16x32xf32>
    %cst_52 = arith.constant dense<0.000000e+00> : vector<16xf32>
    %99 = vector.multi_reduction <add>, %98, %cst_52 [1] : vector<16x32xf32> to vector<16xf32>
    %100 = vector.shape_cast %99 : vector<16xf32> to vector<16x1xf32>
    %cst_53 = arith.constant 3.200000e+01 : f32
    %101 = vector.broadcast %cst_53 : f32 to vector<16x1xf32>
    %102 = arith.divf %100, %101 : vector<16x1xf32>
    %103 = arith.mulf %97, %97 : vector<16x1xf32>
    %104 = arith.subf %102, %103 : vector<16x1xf32>
    %105 = vector.broadcast %97 : vector<16x1xf32> to vector<16x32xf32>
    %106 = arith.subf %93, %105 : vector<16x32xf32>
    %cst_54 = arith.constant 9.99999974E-6 : f32
    %107 = vector.broadcast %cst_54 : f32 to vector<16x1xf32>
    %108 = arith.addf %104, %107 : vector<16x1xf32>
    %109 = math.rsqrt %108 : vector<16x1xf32>
    %110 = vector.broadcast %109 : vector<16x1xf32> to vector<16x32xf32>
    %111 = arith.mulf %106, %110 : vector<16x32xf32>
    %c0_55 = arith.constant 0 : index
    %c0_56 = arith.constant 0 : index
    %112 = vector.load %arg10[%c0_55, %c0_56] : memref<1x32xf32, #tpu.memory_space<vmem>>, vector<1x32xf32>
    %113 = vector.broadcast %112 : vector<1x32xf32> to vector<16x32xf32>
    %114 = arith.mulf %111, %113 : vector<16x32xf32>
    %c0_57 = arith.constant 0 : index
    %c0_58 = arith.constant 0 : index
    %115 = vector.load %arg11[%c0_57, %c0_58] : memref<1x32xf32, #tpu.memory_space<vmem>>, vector<1x32xf32>
    %116 = vector.broadcast %115 : vector<1x32xf32> to vector<16x32xf32>
    %117 = arith.addf %114, %116 : vector<16x32xf32>
    %c0_59 = arith.constant 0 : index
    %c0_60 = arith.constant 0 : index
    %118 = vector.load %arg12[%c0_59, %c0_60] : memref<32x128xf32, #tpu.memory_space<vmem>>, vector<32x128xf32>
    %cst_61 = arith.constant dense<0.000000e+00> : vector<16x128xf32>
    %119 = tpu.matmul %117, %118, %cst_61 {dimension_numbers = #tpu.dot_dimension_numbers<[1], [0], [0], [1], [0, 0, 1, 1], [], []>} : vector<16x32xf32>, vector<32x128xf32>, vector<16x128xf32> -> vector<16x128xf32>
    %c0_62 = arith.constant 0 : index
    %c0_63 = arith.constant 0 : index
    %120 = vector.load %arg13[%c0_62, %c0_63] : memref<1x128xf32, #tpu.memory_space<vmem>>, vector<1x128xf32>
    %121 = vector.broadcast %120 : vector<1x128xf32> to vector<16x128xf32>
    %122 = arith.addf %119, %121 : vector<16x128xf32>
    %cst_64 = arith.constant 5.000000e-01 : f32
    %123 = vector.broadcast %cst_64 : f32 to vector<16x128xf32>
    %124 = arith.mulf %123, %122 : vector<16x128xf32>
    %cst_65 = arith.constant 0.707106769 : f32
    %125 = vector.broadcast %cst_65 : f32 to vector<16x128xf32>
    %126 = arith.mulf %122, %125 : vector<16x128xf32>
    %127 = math.erf %126 : vector<16x128xf32>
    %cst_66 = arith.constant 1.000000e+00 : f32
    %128 = vector.broadcast %cst_66 : f32 to vector<16x128xf32>
    %129 = arith.addf %128, %127 : vector<16x128xf32>
    %130 = arith.mulf %124, %129 : vector<16x128xf32>
    %c0_67 = arith.constant 0 : index
    %c0_68 = arith.constant 0 : index
    %131 = vector.load %arg14[%c0_67, %c0_68] : memref<128x32xf32, #tpu.memory_space<vmem>>, vector<128x32xf32>
    %cst_69 = arith.constant dense<0.000000e+00> : vector<16x32xf32>
    %132 = tpu.matmul %130, %131, %cst_69 {dimension_numbers = #tpu.dot_dimension_numbers<[1], [0], [0], [1], [0, 0, 1, 1], [], []>} : vector<16x128xf32>, vector<128x32xf32>, vector<16x32xf32> -> vector<16x32xf32>
    %c0_70 = arith.constant 0 : index
    %c0_71 = arith.constant 0 : index
    %133 = vector.load %arg15[%c0_70, %c0_71] : memref<1x32xf32, #tpu.memory_space<vmem>>, vector<1x32xf32>
    %134 = vector.broadcast %133 : vector<1x32xf32> to vector<16x32xf32>
    %135 = arith.addf %132, %134 : vector<16x32xf32>
    %136 = arith.addf %135, %117 : vector<16x32xf32>
    %cst_72 = arith.constant dense<0.000000e+00> : vector<16xf32>
    %137 = vector.multi_reduction <add>, %136, %cst_72 [1] : vector<16x32xf32> to vector<16xf32>
    %138 = vector.shape_cast %137 : vector<16xf32> to vector<16x1xf32>
    %cst_73 = arith.constant 3.200000e+01 : f32
    %139 = vector.broadcast %cst_73 : f32 to vector<16x1xf32>
    %140 = arith.divf %138, %139 : vector<16x1xf32>
    %141 = arith.mulf %136, %136 : vector<16x32xf32>
    %cst_74 = arith.constant dense<0.000000e+00> : vector<16xf32>
    %142 = vector.multi_reduction <add>, %141, %cst_74 [1] : vector<16x32xf32> to vector<16xf32>
    %143 = vector.shape_cast %142 : vector<16xf32> to vector<16x1xf32>
    %cst_75 = arith.constant 3.200000e+01 : f32
    %144 = vector.broadcast %cst_75 : f32 to vector<16x1xf32>
    %145 = arith.divf %143, %144 : vector<16x1xf32>
    %146 = arith.mulf %140, %140 : vector<16x1xf32>
    %147 = arith.subf %145, %146 : vector<16x1xf32>
    %148 = vector.broadcast %140 : vector<16x1xf32> to vector<16x32xf32>
    %149 = arith.subf %136, %148 : vector<16x32xf32>
    %cst_76 = arith.constant 9.99999974E-6 : f32
    %150 = vector.broadcast %cst_76 : f32 to vector<16x1xf32>
    %151 = arith.addf %147, %150 : vector<16x1xf32>
    %152 = math.rsqrt %151 : vector<16x1xf32>
    %153 = vector.broadcast %152 : vector<16x1xf32> to vector<16x32xf32>
    %154 = arith.mulf %149, %153 : vector<16x32xf32>
    %c0_77 = arith.constant 0 : index
    %c0_78 = arith.constant 0 : index
    %155 = vector.load %arg16[%c0_77, %c0_78] : memref<1x32xf32, #tpu.memory_space<vmem>>, vector<1x32xf32>
    %156 = vector.broadcast %155 : vector<1x32xf32> to vector<16x32xf32>
    %157 = arith.mulf %154, %156 : vector<16x32xf32>
    %c0_79 = arith.constant 0 : index
    %c0_80 = arith.constant 0 : index
    %158 = vector.load %arg17[%c0_79, %c0_80] : memref<1x32xf32, #tpu.memory_space<vmem>>, vector<1x32xf32>
    %159 = vector.broadcast %158 : vector<1x32xf32> to vector<16x32xf32>
    %160 = arith.addf %157, %159 : vector<16x32xf32>
    %161 = vector.shape_cast %160 : vector<16x32xf32> to vector<2x8x32xf32>
    %c0_81 = arith.constant 0 : index
    %c0_82 = arith.constant 0 : index
    %c0_83 = arith.constant 0 : index
    %162 = vector.load %arg18[%c0_81, %c0_82, %c0_83] : memref<2x8x32xf32, #tpu.memory_space<vmem>>, vector<2x8x32xf32>
    tpu.vector_store %arg18[%c0_81, %c0_82, %c0_83], %161 {strides = array<i32>} : memref<2x8x32xf32, #tpu.memory_space<vmem>>, vector<2x8x32xf32>,
    return
  }
  func.func @transform_0(%arg0: i32) -> (i32, i32, i32) {
    %c0_i32 = arith.constant 0 : i32
    %c0_i32_0 = arith.constant 0 : i32
    %c0_i32_1 = arith.constant 0 : i32
    return %arg0, %c0_i32, %c0_i32_0 : i32, i32, i32
  }
  func.func @transform_1(%arg0: i32) -> (i32, i32) {
    %c0_i32 = arith.constant 0 : i32
    %c0_i32_0 = arith.constant 0 : i32
    %c0_i32_1 = arith.constant 0 : i32
    return %c0_i32, %c0_i32_0 : i32, i32
  }
  func.func @transform_2(%arg0: i32) -> (i32, i32) {
    %c0_i32 = arith.constant 0 : i32
    %c0_i32_0 = arith.constant 0 : i32
    %c0_i32_1 = arith.constant 0 : i32
    return %c0_i32, %c0_i32_0 : i32, i32
  }
  func.func @transform_3(%arg0: i32) -> (i32, i32) {
    %c0_i32 = arith.constant 0 : i32
    %c0_i32_0 = arith.constant 0 : i32
    %c0_i32_1 = arith.constant 0 : i32
    return %c0_i32, %c0_i32_0 : i32, i32
  }
  func.func @transform_4(%arg0: i32) -> (i32, i32) {
    %c0_i32 = arith.constant 0 : i32
    %c0_i32_0 = arith.constant 0 : i32
    %c0_i32_1 = arith.constant 0 : i32
    return %c0_i32, %c0_i32_0 : i32, i32
  }
  func.func @transform_5(%arg0: i32) -> (i32, i32) {
    %c0_i32 = arith.constant 0 : i32
    %c0_i32_0 = arith.constant 0 : i32
    %c0_i32_1 = arith.constant 0 : i32
    return %c0_i32, %c0_i32_0 : i32, i32
  }
  func.func @transform_6(%arg0: i32) -> (i32, i32) {
    %c0_i32 = arith.constant 0 : i32
    %c0_i32_0 = arith.constant 0 : i32
    %c0_i32_1 = arith.constant 0 : i32
    return %c0_i32, %c0_i32_0 : i32, i32
  }
  func.func @transform_7(%arg0: i32) -> (i32, i32) {
    %c0_i32 = arith.constant 0 : i32
    %c0_i32_0 = arith.constant 0 : i32
    %c0_i32_1 = arith.constant 0 : i32
    return %c0_i32, %c0_i32_0 : i32, i32
  }
  func.func @transform_8(%arg0: i32) -> (i32, i32) {
    %c0_i32 = arith.constant 0 : i32
    %c0_i32_0 = arith.constant 0 : i32
    %c0_i32_1 = arith.constant 0 : i32
    return %c0_i32, %c0_i32_0 : i32, i32
  }
  func.func @transform_9(%arg0: i32) -> (i32, i32) {
    %c0_i32 = arith.constant 0 : i32
    %c0_i32_0 = arith.constant 0 : i32
    %c0_i32_1 = arith.constant 0 : i32
    return %c0_i32, %c0_i32_0 : i32, i32
  }
  func.func @transform_10(%arg0: i32) -> (i32, i32) {
    %c0_i32 = arith.constant 0 : i32
    %c0_i32_0 = arith.constant 0 : i32
    %c0_i32_1 = arith.constant 0 : i32
    return %c0_i32, %c0_i32_0 : i32, i32
  }
  func.func @transform_11(%arg0: i32) -> (i32, i32) {
    %c0_i32 = arith.constant 0 : i32
    %c0_i32_0 = arith.constant 0 : i32
    %c0_i32_1 = arith.constant 0 : i32
    return %c0_i32, %c0_i32_0 : i32, i32
  }
  func.func @transform_12(%arg0: i32) -> (i32, i32) {
    %c0_i32 = arith.constant 0 : i32
    %c0_i32_0 = arith.constant 0 : i32
    %c0_i32_1 = arith.constant 0 : i32
    return %c0_i32, %c0_i32_0 : i32, i32
  }
  func.func @transform_13(%arg0: i32) -> (i32, i32) {
    %c0_i32 = arith.constant 0 : i32
    %c0_i32_0 = arith.constant 0 : i32
    %c0_i32_1 = arith.constant 0 : i32
    return %c0_i32, %c0_i32_0 : i32, i32
  }
  func.func @transform_14(%arg0: i32) -> (i32, i32) {
    %c0_i32 = arith.constant 0 : i32
    %c0_i32_0 = arith.constant 0 : i32
    %c0_i32_1 = arith.constant 0 : i32
    return %c0_i32, %c0_i32_0 : i32, i32
  }
  func.func @transform_15(%arg0: i32) -> (i32, i32) {
    %c0_i32 = arith.constant 0 : i32
    %c0_i32_0 = arith.constant 0 : i32
    %c0_i32_1 = arith.constant 0 : i32
    return %c0_i32, %c0_i32_0 : i32, i32
  }
  func.func @transform_16(%arg0: i32) -> (i32, i32) {
    %c0_i32 = arith.constant 0 : i32
    %c0_i32_0 = arith.constant 0 : i32
    %c0_i32_1 = arith.constant 0 : i32
    return %c0_i32, %c0_i32_0 : i32, i32
  }
  func.func @transform_17(%arg0: i32) -> (i32, i32, i32) {
    %c0_i32 = arith.constant 0 : i32
    %c0_i32_0 = arith.constant 0 : i32
    %c0_i32_1 = arith.constant 0 : i32
    return %arg0, %c0_i32, %c0_i32_0 : i32, i32, i32
  }
}

</mosaic_0001>

<llo_original>
// kernel: tpu_custom_call.1
$region0: #{tpu_custom_call.1}
  #allocation0 [shape = 'u32[]', space=smem, size = 0x4, offset = 0x4, fixed_abs, tag = 'smem constant byte address 0x4 - core index']
  #allocation1 [shape = 'u32[144,128]{1,0:T(1,128)}', space=vmem, size = 0x12000, scoped, tag = 'internal scratch']
  #allocation2 [shape = 'f32[2,8,32]{2,1,0:T(8,128)}', space=vmem, size = 0x2000, scoped, tag = 'scratch operand']
  %s0 = inlined_call_operand.hbm [shape: f32[2,8,32], index: 0, kind: input, shape index: {}]
  %s1 = inlined_call_operand.vmem [shape: f32[32,32], index: 1, kind: input, shape index: {}]
  %s2 = inlined_call_operand.vmem [shape: f32[1,32], index: 2, kind: input, shape index: {}]
  %s3 = inlined_call_operand.vmem [shape: f32[32,32], index: 3, kind: input, shape index: {}]
  %s4 = inlined_call_operand.vmem [shape: f32[1,32], index: 4, kind: input, shape index: {}]
  %s5 = inlined_call_operand.vmem [shape: f32[32,32], index: 5, kind: input, shape index: {}]
  %s6 = inlined_call_operand.vmem [shape: f32[1,32], index: 6, kind: input, shape index: {}]
  %s7 = inlined_call_operand.vmem [shape: f32[32,32], index: 7, kind: input, shape index: {}]
  %s8 = inlined_call_operand.vmem [shape: f32[1,32], index: 8, kind: input, shape index: {}]
  %s9 = inlined_call_operand.vmem [shape: f32[1,32], index: 9, kind: input, shape index: {}]
  %s10 = inlined_call_operand.vmem [shape: f32[1,32], index: 10, kind: input, shape index: {}]
  %s11 = inlined_call_operand.vmem [shape: f32[32,128], index: 11, kind: input, shape index: {}]
  %s12 = inlined_call_operand.vmem [shape: f32[1,128], index: 12, kind: input, shape index: {}]
  %s13 = inlined_call_operand.vmem [shape: f32[128,32], index: 13, kind: input, shape index: {}]
  %s14 = inlined_call_operand.vmem [shape: f32[1,32], index: 14, kind: input, shape index: {}]
  %s15 = inlined_call_operand.vmem [shape: f32[1,32], index: 15, kind: input, shape index: {}]
  %s16 = inlined_call_operand.vmem [shape: f32[1,32], index: 16, kind: input, shape index: {}]
  %s17 = inlined_call_operand.hbm [shape: f32[2,8,32], index: 17, kind: output, shape index: {}]
  %s18 = sld [smem:[#allocation0]]
  $region82: #{tpu_custom_call.1} parent=0
    _
  %s20 = ssub.s32 1, %s18
  %s21 = scalar_select 0, %s20, %s18
  $region1: #{tpu_custom_call.1} parent=0
    #allocation3 [shape = 'u8[8192]{0}', space=vmem, size = 0x2000, scoped, tag = 'input window, operand 0, single buffered']
    #allocation4 [shape = 's32[1]{0}', space=sflag, size = 0x4, scoped, tag = 'scoped memory for tpu_custom_call.1']
    #allocation5 [shape = 's32[1]{0}', space=sflag, size = 0x4, scoped, tag = 'scoped memory for tpu_custom_call.1']
    #allocation6 [shape = 'u8[8192]{0}', space=vmem, size = 0x2000, scoped, tag = 'output window, operand 0, single buffered']
    %22 = vsyncpa [#allocation4], 0
    %23 = vsyncpa [#allocation5], 0
    // Predicated region
    $region2: #{tpu_custom_call.1} parent=1 // pred_check
      _
    $region3: #{tpu_custom_call.1} parent=1 // pred_check_branch
      %25 = sbr.rel (0) target = $region5
    $region4: #{tpu_custom_call.1} parent=1 // pred_region
      %s27 = ssub.s32 256, 256
      %28 = vsyncadd [#allocation4], %s27
      %s29 = sshll.u32 [#allocation3], 4
      %s30 = int_to_ptr.vmem [resolvable:$true] %s29
      %35 = dma.hbm_to_vmem [thread:$0]  %s0, 256, %s30, [#allocation4], 128, 128, 8
    $region5: #{tpu_custom_call.1} parent=1 // pred_fallthru
      _
    // Predicated region
    $region6: #{tpu_custom_call.1} parent=1 // pred_check
      _
    $region7: #{tpu_custom_call.1} parent=1 // pred_check_branch
      %37 = sbr.rel (0) target = $region9
    $region8: #{tpu_custom_call.1} parent=1 // pred_region
      _
    $region9: #{tpu_custom_call.1} parent=1 // pred_fallthru
      _
    // Predicated region
    $region10: #{tpu_custom_call.1} parent=1 // pred_check
      _
    $region11: #{tpu_custom_call.1} parent=1 // pred_check_branch
      %39 = sbr.rel (0) target = $region13
    $region12: #{tpu_custom_call.1} parent=1 // pred_region
      _
    $region13: #{tpu_custom_call.1} parent=1 // pred_fallthru
      _
    // Predicated region
    $region14: #{tpu_custom_call.1} parent=1 // pred_check
      _
    $region15: #{tpu_custom_call.1} parent=1 // pred_check_branch
      %41 = sbr.rel (0) target = $region17
    $region16: #{tpu_custom_call.1} parent=1 // pred_region
      _
    $region17: #{tpu_custom_call.1} parent=1 // pred_fallthru
      _
    // Predicated region
    $region18: #{tpu_custom_call.1} parent=1 // pred_check
      _
    $region19: #{tpu_custom_call.1} parent=1 // pred_check_branch
      %43 = sbr.rel (0) target = $region21
    $region20: #{tpu_custom_call.1} parent=1 // pred_region
      _
    $region21: #{tpu_custom_call.1} parent=1 // pred_fallthru
      _
    // Predicated region
    $region22: #{tpu_custom_call.1} parent=1 // pred_check
      _
    $region23: #{tpu_custom_call.1} parent=1 // pred_check_branch
      %45 = sbr.rel (0) target = $region25
    $region24: #{tpu_custom_call.1} parent=1 // pred_region
      _
    $region25: #{tpu_custom_call.1} parent=1 // pred_fallthru
      _
    // Predicated region
    $region26: #{tpu_custom_call.1} parent=1 // pred_check
      _
    $region27: #{tpu_custom_call.1} parent=1 // pred_check_branch
      %47 = sbr.rel (0) target = $region29
    $region28: #{tpu_custom_call.1} parent=1 // pred_region
      _
    $region29: #{tpu_custom_call.1} parent=1 // pred_fallthru
      _
    // Predicated region
    $region30: #{tpu_custom_call.1} parent=1 // pred_check
      _
    $region31: #{tpu_custom_call.1} parent=1 // pred_check_branch
      %49 = sbr.rel (0) target = $region33
    $region32: #{tpu_custom_call.1} parent=1 // pred_region
      _
    $region33: #{tpu_custom_call.1} parent=1 // pred_fallthru
      _
    // Predicated region
    $region34: #{tpu_custom_call.1} parent=1 // pred_check
      _
    $region35: #{tpu_custom_call.1} parent=1 // pred_check_branch
      %51 = sbr.rel (0) target = $region37
    $region36: #{tpu_custom_call.1} parent=1 // pred_region
      _
    $region37: #{tpu_custom_call.1} parent=1 // pred_fallthru
      _
    // Predicated region
    $region38: #{tpu_custom_call.1} parent=1 // pred_check
      _
    $region39: #{tpu_custom_call.1} parent=1 // pred_check_branch
      %53 = sbr.rel (0) target = $region41
    $region40: #{tpu_custom_call.1} parent=1 // pred_region
      _
    $region41: #{tpu_custom_call.1} parent=1 // pred_fallthru
      _
    // Predicated region
    $region42: #{tpu_custom_call.1} parent=1 // pred_check
      _
    $region43: #{tpu_custom_call.1} parent=1 // pred_check_branch
      %55 = sbr.rel (0) target = $region45
    $region44: #{tpu_custom_call.1} parent=1 // pred_region
      _
    $region45: #{tpu_custom_call.1} parent=1 // pred_fallthru
      _
    // Predicated region
    $region46: #{tpu_custom_call.1} parent=1 // pred_check
      _
    $region47: #{tpu_custom_call.1} parent=1 // pred_check_branch
      %57 = sbr.rel (0) target = $region49
    $region48: #{tpu_custom_call.1} parent=1 // pred_region
      _
    $region49: #{tpu_custom_call.1} parent=1 // pred_fallthru
      _
    // Predicated region
    $region50: #{tpu_custom_call.1} parent=1 // pred_check
      _
    $region51: #{tpu_custom_call.1} parent=1 // pred_check_branch
      %59 = sbr.rel (0) target = $region53
    $region52: #{tpu_custom_call.1} parent=1 // pred_region
      _
    $region53: #{tpu_custom_call.1} parent=1 // pred_fallthru
      _
    // Predicated region
    $region54: #{tpu_custom_call.1} parent=1 // pred_check
      _
    $region55: #{tpu_custom_call.1} parent=1 // pred_check_branch
      %61 = sbr.rel (0) target = $region57
    $region56: #{tpu_custom_call.1} parent=1 // pred_region
      _
    $region57: #{tpu_custom_call.1} parent=1 // pred_fallthru
      _
    // Predicated region
    $region58: #{tpu_custom_call.1} parent=1 // pred_check
      _
    $region59: #{tpu_custom_call.1} parent=1 // pred_check_branch
      %63 = sbr.rel (0) target = $region61
    $region60: #{tpu_custom_call.1} parent=1 // pred_region
      _
    $region61: #{tpu_custom_call.1} parent=1 // pred_fallthru
      _
    // Predicated region
    $region62: #{tpu_custom_call.1} parent=1 // pred_check
      _
    $region63: #{tpu_custom_call.1} parent=1 // pred_check_branch
      %65 = sbr.rel (0) target = $region65
    $region64: #{tpu_custom_call.1} parent=1 // pred_region
      _
    $region65: #{tpu_custom_call.1} parent=1 // pred_fallthru
      _
    // Predicated region
    $region66: #{tpu_custom_call.1} parent=1 // pred_check
      _
    $region67: #{tpu_custom_call.1} parent=1 // pred_check_branch
      %67 = sbr.rel (0) target = $region69
    $region68: #{tpu_custom_call.1} parent=1 // pred_region
      _
    $region69: #{tpu_custom_call.1} parent=1 // pred_fallthru
      _
    // Predicated region
    $region70: #{tpu_custom_call.1} parent=1 // pred_check
      _
    $region71: #{tpu_custom_call.1} parent=1 // pred_check_branch
      %69 = sbr.rel (0) target = $region73
    $region72: #{tpu_custom_call.1} parent=1 // pred_region
      %70 = dma.done [#allocation4], 256
    $region73: #{tpu_custom_call.1} parent=1 // pred_fallthru
      _
    %v71 = vld [vmem:[#allocation3] sm:$0xff]
    %v72 = vld [vmem:[#allocation3 + $0x8] sm:$0xff]
    %v73 = vld [vmem:[%s1] sm:$0xff]
    %v74 = vld [vmem:[%s1 + $0x8] sm:$0xff]
    %v75 = vld [vmem:[%s1 + $0x10] sm:$0xff]
    %v76 = vld [vmem:[%s1 + $0x18] sm:$0xff]
    %v77 = vld [vmem:[%s2] sm:$0x1]
    %v79 = vlaneseq
    %v80 = vshrl.u32 %v79, 7
    %v81 = vsub.s32 0, %v80
    %v82 = vrot.slane %v77, %v81
    %vm84 = vcmask 261120
    %v86 = vsel %vm84, %v71, 0
    %v89 = vsel %vm84, %v72, 0
    %91 = vmatprep.subr.mxu0 0.0
    %92 = vmatpush1.msra.mxu0 %v73
    %93 = vmatprep.subr.mxu0 0.0
    %94 = vmatpush1.msra.mxu0 %v74
    %95 = vmatprep.subr.mxu0 0.0
    %96 = vmatpush1.msra.mxu0 %v75
    %97 = vmatprep.subr.mxu0 0.0
    %98 = vmatpush1.msra.mxu0 %v76
    %99 = vmatprep.subr.mxu0 0.0
    %100 = vmatpush1.msra.mxu0 0.0
    %101 = vmatprep.subr.mxu0 0.0
    %102 = vmatpush1.msra.mxu0 0.0
    %103 = vmatprep.subr.mxu0 0.0
    %104 = vmatpush1.msra.mxu0 0.0
    %105 = vmatprep.subr.mxu0 0.0
    %106 = vmatpush1.msra.mxu0 0.0
    %107 = vmatprep.subr.mxu0 0.0
    %108 = vmatpush1.msra.mxu0 0.0
    %109 = vmatprep.subr.mxu0 0.0
    %110 = vmatpush1.msra.mxu0 0.0
    %111 = vmatprep.subr.mxu0 0.0
    %112 = vmatpush1.msra.mxu0 0.0
    %113 = vmatprep.subr.mxu0 0.0
    %114 = vmatpush1.msra.mxu0 0.0
    %115 = vmatprep.subr.mxu0 0.0
    %116 = vmatpush1.msra.mxu0 0.0
    %117 = vmatprep.subr.mxu0 0.0
    %118 = vmatpush1.msra.mxu0 0.0
    %119 = vmatprep.subr.mxu0 0.0
    %120 = vmatpush1.msra.mxu0 0.0
    %121 = vmatprep.subr.mxu0 0.0
    %122 = vmatpush1.msra.mxu0 0.0
    %123 = vmatprep.subr.mxu0 0.0
    %124 = vmatpush1.msra.mxu0 0.0
    %125 = vmatprep.subr.mxu0 0.0
    %126 = vmatpush1.msra.mxu0 0.0
    %127 = vmatprep.subr.mxu0 0.0
    %128 = vmatpush1.msra.mxu0 0.0
    %129 = vmatprep.subr.mxu0 0.0
    %130 = vmatpush1.msra.mxu0 0.0
    %131 = vmatprep.subr.mxu0 0.0
    %132 = vmatpush1.msra.mxu0 0.0
    %133 = vmatprep.subr.mxu0 0.0
    %134 = vmatpush1.msra.mxu0 0.0
    %135 = vmatprep.subr.mxu0 0.0
    %136 = vmatpush1.msra.mxu0 0.0
    %137 = vmatprep.subr.mxu0 0.0
    %138 = vmatpush1.msra.mxu0 0.0
    %139 = vmatprep.subr.mxu0 0.0
    %140 = vmatpush1.msra.mxu0 0.0
    %141 = vmatprep.subr.mxu0 0.0
    %142 = vmatpush1.msra.mxu0 0.0
    %143 = vmatprep.subr.mxu0 0.0
    %144 = vmatpush1.msra.mxu0 0.0
    %145 = vmatprep.subr.mxu0 0.0
    %146 = vmatpush1.msra.mxu0 0.0
    %147 = vmatprep.subr.mxu0 0.0
    %148 = vmatpush1.msra.mxu0 0.0
    %149 = vmatprep.subr.mxu0 0.0
    %150 = vmatpush1.msra.mxu0 0.0
    %151 = vmatprep.subr.mxu0 0.0
    %152 = vmatpush1.msra.mxu0 0.0
    %153 = vmatprep.subr.mxu0 0.0
    %154 = vmatpush1.msra.mxu0 0.0
    %155 = vmatprep.mubr.f32.mxu0 0.0
    %156 = vmatmul.mubr.f32.gmra.mrb[0].mxu0 %v86
    %v157 = vpop.f32.mrb[0].mxu0
    %v158 = vadd.f32 %v82, %v157
    %v159 = vpop.f32.mrb[0].mxu0
    %160 = vmatprep.mubr.f32.mxu0 0.0
    %161 = vmatmul.mubr.f32.gmra.mrb[0].mxu0 %v89
    %v162 = vpop.f32.mrb[0].mxu0
    %v163 = vadd.f32 %v82, %v162
    %v164 = vpop.f32.mrb[0].mxu0
    %165 = vdwg.mxu0
    %v166 = vld [vmem:[%s3] sm:$0xff]
    %v167 = vld [vmem:[%s3 + $0x8] sm:$0xff]
    %v168 = vld [vmem:[%s3 + $0x10] sm:$0xff]
    %v169 = vld [vmem:[%s3 + $0x18] sm:$0xff]
    %v170 = vld [vmem:[%s4] sm:$0x1]
    %v172 = vlaneseq
    %v173 = vshrl.u32 %v172, 7
    %v174 = vsub.s32 0, %v173
    %v175 = vrot.slane %v170, %v174
    %177 = vmatprep.subr.mxu0 0.0
    %178 = vmatpush1.msra.mxu0 %v166
    %179 = vmatprep.subr.mxu0 0.0
    %180 = vmatpush1.msra.mxu0 %v167
    %181 = vmatprep.subr.mxu0 0.0
    %182 = vmatpush1.msra.mxu0 %v168
    %183 = vmatprep.subr.mxu0 0.0
    %184 = vmatpush1.msra.mxu0 %v169
    %185 = vmatprep.subr.mxu0 0.0
    %186 = vmatpush1.msra.mxu0 0.0
    %187 = vmatprep.subr.mxu0 0.0
    %188 = vmatpush1.msra.mxu0 0.0
    %189 = vmatprep.subr.mxu0 0.0
    %190 = vmatpush1.msra.mxu0 0.0
    %191 = vmatprep.subr.mxu0 0.0
    %192 = vmatpush1.msra.mxu0 0.0
    %193 = vmatprep.subr.mxu0 0.0
    %194 = vmatpush1.msra.mxu0 0.0
    %195 = vmatprep.subr.mxu0 0.0
    %196 = vmatpush1.msra.mxu0 0.0
    %197 = vmatprep.subr.mxu0 0.0
    %198 = vmatpush1.msra.mxu0 0.0
    %199 = vmatprep.subr.mxu0 0.0
    %200 = vmatpush1.msra.mxu0 0.0
    %201 = vmatprep.subr.mxu0 0.0
    %202 = vmatpush1.msra.mxu0 0.0
    %203 = vmatprep.subr.mxu0 0.0
    %204 = vmatpush1.msra.mxu0 0.0
    %205 = vmatprep.subr.mxu0 0.0
    %206 = vmatpush1.msra.mxu0 0.0
    %207 = vmatprep.subr.mxu0 0.0
    %208 = vmatpush1.msra.mxu0 0.0
    %209 = vmatprep.subr.mxu0 0.0
    %210 = vmatpush1.msra.mxu0 0.0
    %211 = vmatprep.subr.mxu0 0.0
    %212 = vmatpush1.msra.mxu0 0.0
    %213 = vmatprep.subr.mxu0 0.0
    %214 = vmatpush1.msra.mxu0 0.0
    %215 = vmatprep.subr.mxu0 0.0
    %216 = vmatpush1.msra.mxu0 0.0
    %217 = vmatprep.subr.mxu0 0.0
    %218 = vmatpush1.msra.mxu0 0.0
    %219 = vmatprep.subr.mxu0 0.0
    %220 = vmatpush1.msra.mxu0 0.0
    %221 = vmatprep.subr.mxu0 0.0
    %222 = vmatpush1.msra.mxu0 0.0
    %223 = vmatprep.subr.mxu0 0.0
    %224 = vmatpush1.msra.mxu0 0.0
    %225 = vmatprep.subr.mxu0 0.0
    %226 = vmatpush1.msra.mxu0 0.0
    %227 = vmatprep.subr.mxu0 0.0
    %228 = vmatpush1.msra.mxu0 0.0
    %229 = vmatprep.subr.mxu0 0.0
    %230 = vmatpush1.msra.mxu0 0.0
    %231 = vmatprep.subr.mxu0 0.0
    %232 = vmatpush1.msra.mxu0 0.0
    %233 = vmatprep.subr.mxu0 0.0
    %234 = vmatpush1.msra.mxu0 0.0
    %235 = vmatprep.subr.mxu0 0.0
    %236 = vmatpush1.msra.mxu0 0.0
    %237 = vmatprep.subr.mxu0 0.0
    %238 = vmatpush1.msra.mxu0 0.0
    %239 = vmatprep.subr.mxu0 0.0
    %240 = vmatpush1.msra.mxu0 0.0
    %241 = vmatprep.mubr.f32.mxu0 0.0
    %242 = vmatmul.mubr.f32.gmra.mrb[0].mxu0 %v86
    %v243 = vpop.f32.mrb[0].mxu0
    %v244 = vadd.f32 %v175, %v243
    %v245 = vpop.f32.mrb[0].mxu0
    %246 = vmatprep.mubr.f32.mxu0 0.0
    %247 = vmatmul.mubr.f32.gmra.mrb[0].mxu0 %v89
    %v248 = vpop.f32.mrb[0].mxu0
    %v249 = vadd.f32 %v175, %v248
    %v250 = vpop.f32.mrb[0].mxu0
    %251 = vdwg.mxu0
    %v252 = vld [vmem:[%s5] sm:$0xff]
    %v253 = vld [vmem:[%s5 + $0x8] sm:$0xff]
    %v254 = vld [vmem:[%s5 + $0x10] sm:$0xff]
    %v255 = vld [vmem:[%s5 + $0x18] sm:$0xff]
    %v256 = vld [vmem:[%s6] sm:$0x1]
    %v258 = vlaneseq
    %v259 = vshrl.u32 %v258, 7
    %v260 = vsub.s32 0, %v259
    %v261 = vrot.slane %v256, %v260
    %263 = vmatprep.subr.mxu0 0.0
    %264 = vmatpush1.msra.mxu0 %v252
    %265 = vmatprep.subr.mxu0 0.0
    %266 = vmatpush1.msra.mxu0 %v253
    %267 = vmatprep.subr.mxu0 0.0
    %268 = vmatpush1.msra.mxu0 %v254
    %269 = vmatprep.subr.mxu0 0.0
    %270 = vmatpush1.msra.mxu0 %v255
    %271 = vmatprep.subr.mxu0 0.0
    %272 = vmatpush1.msra.mxu0 0.0
    %273 = vmatprep.subr.mxu0 0.0
    %274 = vmatpush1.msra.mxu0 0.0
    %275 = vmatprep.subr.mxu0 0.0
    %276 = vmatpush1.msra.mxu0 0.0
    %277 = vmatprep.subr.mxu0 0.0
    %278 = vmatpush1.msra.mxu0 0.0
    %279 = vmatprep.subr.mxu0 0.0
    %280 = vmatpush1.msra.mxu0 0.0
    %281 = vmatprep.subr.mxu0 0.0
    %282 = vmatpush1.msra.mxu0 0.0
    %283 = vmatprep.subr.mxu0 0.0
    %284 = vmatpush1.msra.mxu0 0.0
    %285 = vmatprep.subr.mxu0 0.0
    %286 = vmatpush1.msra.mxu0 0.0
    %287 = vmatprep.subr.mxu0 0.0
    %288 = vmatpush1.msra.mxu0 0.0
    %289 = vmatprep.subr.mxu0 0.0
    %290 = vmatpush1.msra.mxu0 0.0
    %291 = vmatprep.subr.mxu0 0.0
    %292 = vmatpush1.msra.mxu0 0.0
    %293 = vmatprep.subr.mxu0 0.0
    %294 = vmatpush1.msra.mxu0 0.0
    %295 = vmatprep.subr.mxu0 0.0
    %296 = vmatpush1.msra.mxu0 0.0
    %297 = vmatprep.subr.mxu0 0.0
    %298 = vmatpush1.msra.mxu0 0.0
    %299 = vmatprep.subr.mxu0 0.0
    %300 = vmatpush1.msra.mxu0 0.0
    %301 = vmatprep.subr.mxu0 0.0
    %302 = vmatpush1.msra.mxu0 0.0
    %303 = vmatprep.subr.mxu0 0.0
    %304 = vmatpush1.msra.mxu0 0.0
    %305 = vmatprep.subr.mxu0 0.0
    %306 = vmatpush1.msra.mxu0 0.0
    %307 = vmatprep.subr.mxu0 0.0
    %308 = vmatpush1.msra.mxu0 0.0
    %309 = vmatprep.subr.mxu0 0.0
    %310 = vmatpush1.msra.mxu0 0.0
    %311 = vmatprep.subr.mxu0 0.0
    %312 = vmatpush1.msra.mxu0 0.0
    %313 = vmatprep.subr.mxu0 0.0
    %314 = vmatpush1.msra.mxu0 0.0
    %315 = vmatprep.subr.mxu0 0.0
    %316 = vmatpush1.msra.mxu0 0.0
    %317 = vmatprep.subr.mxu0 0.0
    %318 = vmatpush1.msra.mxu0 0.0
    %319 = vmatprep.subr.mxu0 0.0
    %320 = vmatpush1.msra.mxu0 0.0
    %321 = vmatprep.subr.mxu0 0.0
    %322 = vmatpush1.msra.mxu0 0.0
    %323 = vmatprep.subr.mxu0 0.0
    %324 = vmatpush1.msra.mxu0 0.0
    %325 = vmatprep.subr.mxu0 0.0
    %326 = vmatpush1.msra.mxu0 0.0
    %327 = vmatprep.mubr.f32.mxu0 0.0
    %328 = vmatmul.mubr.f32.gmra.mrb[0].mxu0 %v86
    %v329 = vpop.f32.mrb[0].mxu0
    %v330 = vadd.f32 %v261, %v329
    %v331 = vpop.f32.mrb[0].mxu0
    %332 = vmatprep.mubr.f32.mxu0 0.0
    %333 = vmatmul.mubr.f32.gmra.mrb[0].mxu0 %v89
    %v334 = vpop.f32.mrb[0].mxu0
    %v335 = vadd.f32 %v261, %v334
    %v336 = vpop.f32.mrb[0].mxu0
    %337 = vdwg.mxu0
    %v338 = vmul.f32 %v158, 0.35355338
    %v339 = vmul.f32 %v163, 0.35355338
    %vm340 = vcmask 64512
    %v342 = vsel %vm340, %v338, 0
    %v345 = vsel %vm340, %v244, 0
    %347 = vmatprep.subr.mxu0 0.0
    %348 = vmatpush1.xpose.msra.mxu0 %v345
    %349 = vmatprep.subr.mxu0 0.0
    %350 = vmatpush1.xpose.msra.mxu0 0.0
    %351 = vmatprep.subr.mxu0 0.0
    %352 = vmatpush1.xpose.msra.mxu0 0.0
    %353 = vmatprep.subr.mxu0 0.0
    %354 = vmatpush1.xpose.msra.mxu0 0.0
    %355 = vmatprep.subr.mxu0 0.0
    %356 = vmatpush1.xpose.msra.mxu0 0.0
    %357 = vmatprep.subr.mxu0 0.0
    %358 = vmatpush1.xpose.msra.mxu0 0.0
    %359 = vmatprep.subr.mxu0 0.0
    %360 = vmatpush1.xpose.msra.mxu0 0.0
    %361 = vmatprep.subr.mxu0 0.0
    %362 = vmatpush1.xpose.msra.mxu0 0.0
    %363 = vmatprep.subr.mxu0 0.0
    %364 = vmatpush1.xpose.msra.mxu0 0.0
    %365 = vmatprep.subr.mxu0 0.0
    %366 = vmatpush1.xpose.msra.mxu0 0.0
    %367 = vmatprep.subr.mxu0 0.0
    %368 = vmatpush1.xpose.msra.mxu0 0.0
    %369 = vmatprep.subr.mxu0 0.0
    %370 = vmatpush1.xpose.msra.mxu0 0.0
    %371 = vmatprep.subr.mxu0 0.0
    %372 = vmatpush1.xpose.msra.mxu0 0.0
    %373 = vmatprep.subr.mxu0 0.0
    %374 = vmatpush1.xpose.msra.mxu0 0.0
    %375 = vmatprep.subr.mxu0 0.0
    %376 = vmatpush1.xpose.msra.mxu0 0.0
    %377 = vmatprep.subr.mxu0 0.0
    %378 = vmatpush1.xpose.msra.mxu0 0.0
    %379 = vmatprep.subr.mxu0 0.0
    %380 = vmatpush1.xpose.msra.mxu0 0.0
    %381 = vmatprep.subr.mxu0 0.0
    %382 = vmatpush1.xpose.msra.mxu0 0.0
    %383 = vmatprep.subr.mxu0 0.0
    %384 = vmatpush1.xpose.msra.mxu0 0.0
    %385 = vmatprep.subr.mxu0 0.0
    %386 = vmatpush1.xpose.msra.mxu0 0.0
    %387 = vmatprep.subr.mxu0 0.0
    %388 = vmatpush1.xpose.msra.mxu0 0.0
    %389 = vmatprep.subr.mxu0 0.0
    %390 = vmatpush1.xpose.msra.mxu0 0.0
    %391 = vmatprep.subr.mxu0 0.0
    %392 = vmatpush1.xpose.msra.mxu0 0.0
    %393 = vmatprep.subr.mxu0 0.0
    %394 = vmatpush1.xpose.msra.mxu0 0.0
    %395 = vmatprep.subr.mxu0 0.0
    %396 = vmatpush1.xpose.msra.mxu0 0.0
    %397 = vmatprep.subr.mxu0 0.0
    %398 = vmatpush1.xpose.msra.mxu0 0.0
    %399 = vmatprep.subr.mxu0 0.0
    %400 = vmatpush1.xpose.msra.mxu0 0.0
    %401 = vmatprep.subr.mxu0 0.0
    %402 = vmatpush1.xpose.msra.mxu0 0.0
    %403 = vmatprep.subr.mxu0 0.0
    %404 = vmatpush1.xpose.msra.mxu0 0.0
    %405 = vmatprep.subr.mxu0 0.0
    %406 = vmatpush1.xpose.msra.mxu0 0.0
    %407 = vmatprep.subr.mxu0 0.0
    %408 = vmatpush1.xpose.msra.mxu0 0.0
    %409 = vmatprep.subr.mxu0 0.0
    %410 = vmatpush1.xpose.msra.mxu0 0.0
    %411 = vmatprep.mubr.f32.mxu0 0.0
    %412 = vmatmul.mubr.f32.gmra.mrb[0].mxu0 %v342
    %v413 = vpop.f32.mrb[0].mxu0
    %v414 = vadd.f32 0.0, %v413
    %v415 = vpop.f32.mrb[0].mxu0
    %416 = vdwg.mxu0
    %v418 = vsel %vm340, %v339, 0
    %v421 = vsel %vm340, %v249, 0
    %423 = vmatprep.subr.mxu0 0.0
    %424 = vmatpush1.xpose.msra.mxu0 %v421
    %425 = vmatprep.subr.mxu0 0.0
    %426 = vmatpush1.xpose.msra.mxu0 0.0
    %427 = vmatprep.subr.mxu0 0.0
    %428 = vmatpush1.xpose.msra.mxu0 0.0
    %429 = vmatprep.subr.mxu0 0.0
    %430 = vmatpush1.xpose.msra.mxu0 0.0
    %431 = vmatprep.subr.mxu0 0.0
    %432 = vmatpush1.xpose.msra.mxu0 0.0
    %433 = vmatprep.subr.mxu0 0.0
    %434 = vmatpush1.xpose.msra.mxu0 0.0
    %435 = vmatprep.subr.mxu0 0.0
    %436 = vmatpush1.xpose.msra.mxu0 0.0
    %437 = vmatprep.subr.mxu0 0.0
    %438 = vmatpush1.xpose.msra.mxu0 0.0
    %439 = vmatprep.subr.mxu0 0.0
    %440 = vmatpush1.xpose.msra.mxu0 0.0
    %441 = vmatprep.subr.mxu0 0.0
    %442 = vmatpush1.xpose.msra.mxu0 0.0
    %443 = vmatprep.subr.mxu0 0.0
    %444 = vmatpush1.xpose.msra.mxu0 0.0
    %445 = vmatprep.subr.mxu0 0.0
    %446 = vmatpush1.xpose.msra.mxu0 0.0
    %447 = vmatprep.subr.mxu0 0.0
    %448 = vmatpush1.xpose.msra.mxu0 0.0
    %449 = vmatprep.subr.mxu0 0.0
    %450 = vmatpush1.xpose.msra.mxu0 0.0
    %451 = vmatprep.subr.mxu0 0.0
    %452 = vmatpush1.xpose.msra.mxu0 0.0
    %453 = vmatprep.subr.mxu0 0.0
    %454 = vmatpush1.xpose.msra.mxu0 0.0
    %455 = vmatprep.subr.mxu0 0.0
    %456 = vmatpush1.xpose.msra.mxu0 0.0
    %457 = vmatprep.subr.mxu0 0.0
    %458 = vmatpush1.xpose.msra.mxu0 0.0
    %459 = vmatprep.subr.mxu0 0.0
    %460 = vmatpush1.xpose.msra.mxu0 0.0
    %461 = vmatprep.subr.mxu0 0.0
    %462 = vmatpush1.xpose.msra.mxu0 0.0
    %463 = vmatprep.subr.mxu0 0.0
    %464 = vmatpush1.xpose.msra.mxu0 0.0
    %465 = vmatprep.subr.mxu0 0.0
    %466 = vmatpush1.xpose.msra.mxu0 0.0
    %467 = vmatprep.subr.mxu0 0.0
    %468 = vmatpush1.xpose.msra.mxu0 0.0
    %469 = vmatprep.subr.mxu0 0.0
    %470 = vmatpush1.xpose.msra.mxu0 0.0
    %471 = vmatprep.subr.mxu0 0.0
    %472 = vmatpush1.xpose.msra.mxu0 0.0
    %473 = vmatprep.subr.mxu0 0.0
    %474 = vmatpush1.xpose.msra.mxu0 0.0
    %475 = vmatprep.subr.mxu0 0.0
    %476 = vmatpush1.xpose.msra.mxu0 0.0
    %477 = vmatprep.subr.mxu0 0.0
    %478 = vmatpush1.xpose.msra.mxu0 0.0
    %479 = vmatprep.subr.mxu0 0.0
    %480 = vmatpush1.xpose.msra.mxu0 0.0
    %481 = vmatprep.subr.mxu0 0.0
    %482 = vmatpush1.xpose.msra.mxu0 0.0
    %483 = vmatprep.subr.mxu0 0.0
    %484 = vmatpush1.xpose.msra.mxu0 0.0
    %485 = vmatprep.subr.mxu0 0.0
    %486 = vmatpush1.xpose.msra.mxu0 0.0
    %487 = vmatprep.mubr.f32.mxu0 0.0
    %488 = vmatmul.mubr.f32.gmra.mrb[0].mxu0 %v418
    %v489 = vpop.f32.mrb[0].mxu0
    %v490 = vadd.f32 0.0, %v489
    %v491 = vpop.f32.mrb[0].mxu0
    %492 = vdwg.mxu0
    %v493 = vsel %vm340, %v414, -inf
    %494 = vmax.xlane.f32.xlu0 %v493
    %v495 = vpop.xlane.xlu0 %494
    %v496 = vsel %vm340, %v490, -inf
    %497 = vmax.xlane.f32.xlu0 %v496
    %v498 = vpop.xlane.xlu0 %497
    %v499 = vsub.f32 %v414, %v495
    %v500 = vsub.f32 %v490, %v498
    %v501 = vmul.f32 %v499, 1.442695
    %v502 = vpow.pop %v501
    %v503 = vmul.f32 %v500, 1.442695
    %v504 = vpow.pop %v503
    %v505 = vsel %vm340, %v502, 0.0
    %506 = vadd.xlane.f32.xlu0 %v505
    %v507 = vpop.xlane.xlu0 %506
    %v508 = vsel %vm340, %v504, 0.0
    %509 = vadd.xlane.f32.xlu0 %v508
    %v510 = vpop.xlane.xlu0 %509
    %v511 = vrcp.pop %v507
    %v512 = vrcp.pop %v510
    %v513 = vmul.f32 %v502, %v511
    %v514 = vmul.f32 %v504, %v512
    %v516 = vsel %vm340, %v513, 0
    %518 = vmatprep.subr.mxu0 0.0
    %519 = vmatpush1.msra.mxu0 %v330
    %520 = vmatprep.subr.mxu0 0.0
    %521 = vmatpush1.msra.mxu0 0.0
    %522 = vmatprep.subr.mxu0 0.0
    %523 = vmatpush1.msra.mxu0 0.0
    %524 = vmatprep.subr.mxu0 0.0
    %525 = vmatpush1.msra.mxu0 0.0
    %526 = vmatprep.subr.mxu0 0.0
    %527 = vmatpush1.msra.mxu0 0.0
    %528 = vmatprep.subr.mxu0 0.0
    %529 = vmatpush1.msra.mxu0 0.0
    %530 = vmatprep.subr.mxu0 0.0
    %531 = vmatpush1.msra.mxu0 0.0
    %532 = vmatprep.subr.mxu0 0.0
    %533 = vmatpush1.msra.mxu0 0.0
    %534 = vmatprep.subr.mxu0 0.0
    %535 = vmatpush1.msra.mxu0 0.0
    %536 = vmatprep.subr.mxu0 0.0
    %537 = vmatpush1.msra.mxu0 0.0
    %538 = vmatprep.subr.mxu0 0.0
    %539 = vmatpush1.msra.mxu0 0.0
    %540 = vmatprep.subr.mxu0 0.0
    %541 = vmatpush1.msra.mxu0 0.0
    %542 = vmatprep.subr.mxu0 0.0
    %543 = vmatpush1.msra.mxu0 0.0
    %544 = vmatprep.subr.mxu0 0.0
    %545 = vmatpush1.msra.mxu0 0.0
    %546 = vmatprep.subr.mxu0 0.0
    %547 = vmatpush1.msra.mxu0 0.0
    %548 = vmatprep.subr.mxu0 0.0
    %549 = vmatpush1.msra.mxu0 0.0
    %550 = vmatprep.subr.mxu0 0.0
    %551 = vmatpush1.msra.mxu0 0.0
    %552 = vmatprep.subr.mxu0 0.0
    %553 = vmatpush1.msra.mxu0 0.0
    %554 = vmatprep.subr.mxu0 0.0
    %555 = vmatpush1.msra.mxu0 0.0
    %556 = vmatprep.subr.mxu0 0.0
    %557 = vmatpush1.msra.mxu0 0.0
    %558 = vmatprep.subr.mxu0 0.0
    %559 = vmatpush1.msra.mxu0 0.0
    %560 = vmatprep.subr.mxu0 0.0
    %561 = vmatpush1.msra.mxu0 0.0
    %562 = vmatprep.subr.mxu0 0.0
    %563 = vmatpush1.msra.mxu0 0.0
    %564 = vmatprep.subr.mxu0 0.0
    %565 = vmatpush1.msra.mxu0 0.0
    %566 = vmatprep.subr.mxu0 0.0
    %567 = vmatpush1.msra.mxu0 0.0
    %568 = vmatprep.subr.mxu0 0.0
    %569 = vmatpush1.msra.mxu0 0.0
    %570 = vmatprep.subr.mxu0 0.0
    %571 = vmatpush1.msra.mxu0 0.0
    %572 = vmatprep.subr.mxu0 0.0
    %573 = vmatpush1.msra.mxu0 0.0
    %574 = vmatprep.subr.mxu0 0.0
    %575 = vmatpush1.msra.mxu0 0.0
    %576 = vmatprep.subr.mxu0 0.0
    %577 = vmatpush1.msra.mxu0 0.0
    %578 = vmatprep.subr.mxu0 0.0
    %579 = vmatpush1.msra.mxu0 0.0
    %580 = vmatprep.subr.mxu0 0.0
    %581 = vmatpush1.msra.mxu0 0.0
    %582 = vmatprep.mubr.f32.mxu0 0.0
    %583 = vmatmul.mubr.f32.gmra.mrb[0].mxu0 %v516
    %v584 = vpop.f32.mrb[0].mxu0
    %v585 = vadd.f32 0.0, %v584
    %v586 = vpop.f32.mrb[0].mxu0
    %587 = vdwg.mxu0
    %v589 = vsel %vm340, %v514, 0
    %591 = vmatprep.subr.mxu0 0.0
    %592 = vmatpush1.msra.mxu0 %v335
    %593 = vmatprep.subr.mxu0 0.0
    %594 = vmatpush1.msra.mxu0 0.0
    %595 = vmatprep.subr.mxu0 0.0
    %596 = vmatpush1.msra.mxu0 0.0
    %597 = vmatprep.subr.mxu0 0.0
    %598 = vmatpush1.msra.mxu0 0.0
    %599 = vmatprep.subr.mxu0 0.0
    %600 = vmatpush1.msra.mxu0 0.0
    %601 = vmatprep.subr.mxu0 0.0
    %602 = vmatpush1.msra.mxu0 0.0
    %603 = vmatprep.subr.mxu0 0.0
    %604 = vmatpush1.msra.mxu0 0.0
    %605 = vmatprep.subr.mxu0 0.0
    %606 = vmatpush1.msra.mxu0 0.0
    %607 = vmatprep.subr.mxu0 0.0
    %608 = vmatpush1.msra.mxu0 0.0
    %609 = vmatprep.subr.mxu0 0.0
    %610 = vmatpush1.msra.mxu0 0.0
    %611 = vmatprep.subr.mxu0 0.0
    %612 = vmatpush1.msra.mxu0 0.0
    %613 = vmatprep.subr.mxu0 0.0
    %614 = vmatpush1.msra.mxu0 0.0
    %615 = vmatprep.subr.mxu0 0.0
    %616 = vmatpush1.msra.mxu0 0.0
    %617 = vmatprep.subr.mxu0 0.0
    %618 = vmatpush1.msra.mxu0 0.0
    %619 = vmatprep.subr.mxu0 0.0
    %620 = vmatpush1.msra.mxu0 0.0
    %621 = vmatprep.subr.mxu0 0.0
    %622 = vmatpush1.msra.mxu0 0.0
    %623 = vmatprep.subr.mxu0 0.0
    %624 = vmatpush1.msra.mxu0 0.0
    %625 = vmatprep.subr.mxu0 0.0
    %626 = vmatpush1.msra.mxu0 0.0
    %627 = vmatprep.subr.mxu0 0.0
    %628 = vmatpush1.msra.mxu0 0.0
    %629 = vmatprep.subr.mxu0 0.0
    %630 = vmatpush1.msra.mxu0 0.0
    %631 = vmatprep.subr.mxu0 0.0
    %632 = vmatpush1.msra.mxu0 0.0
    %633 = vmatprep.subr.mxu0 0.0
    %634 = vmatpush1.msra.mxu0 0.0
    %635 = vmatprep.subr.mxu0 0.0
    %636 = vmatpush1.msra.mxu0 0.0
    %637 = vmatprep.subr.mxu0 0.0
    %638 = vmatpush1.msra.mxu0 0.0
    %639 = vmatprep.subr.mxu0 0.0
    %640 = vmatpush1.msra.mxu0 0.0
    %641 = vmatprep.subr.mxu0 0.0
    %642 = vmatpush1.msra.mxu0 0.0
    %643 = vmatprep.subr.mxu0 0.0
    %644 = vmatpush1.msra.mxu0 0.0
    %645 = vmatprep.subr.mxu0 0.0
    %646 = vmatpush1.msra.mxu0 0.0
    %647 = vmatprep.subr.mxu0 0.0
    %648 = vmatpush1.msra.mxu0 0.0
    %649 = vmatprep.subr.mxu0 0.0
    %650 = vmatpush1.msra.mxu0 0.0
    %651 = vmatprep.subr.mxu0 0.0
    %652 = vmatpush1.msra.mxu0 0.0
    %653 = vmatprep.subr.mxu0 0.0
    %654 = vmatpush1.msra.mxu0 0.0
    %655 = vmatprep.mubr.f32.mxu0 0.0
    %656 = vmatmul.mubr.f32.gmra.mrb[0].mxu0 %v589
    %v657 = vpop.f32.mrb[0].mxu0
    %v658 = vadd.f32 0.0, %v657
    %v659 = vpop.f32.mrb[0].mxu0
    %660 = vdwg.mxu0
    %661 = vst.msk [vmem:[#allocation2] sm:$0xff] %vm340, %v585
    %662 = vst.msk [vmem:[#allocation2 + $0x8] sm:$0xff] %vm340, %v658
    %663 = vrot.lane.b32.xlu0 %v338, 120
    %v664 = vpop.permute.xlu0 %663
    %665 = vrot.lane.b32.xlu0 %v244, 120
    %v666 = vpop.permute.xlu0 %665
    %v667 = vsel %vm340, %v664, 0
    %v669 = vsel %vm340, %v666, 0
    %671 = vmatprep.subr.mxu0 0.0
    %672 = vmatpush1.xpose.msra.mxu0 %v669
    %673 = vmatprep.subr.mxu0 0.0
    %674 = vmatpush1.xpose.msra.mxu0 0.0
    %675 = vmatprep.subr.mxu0 0.0
    %676 = vmatpush1.xpose.msra.mxu0 0.0
    %677 = vmatprep.subr.mxu0 0.0
    %678 = vmatpush1.xpose.msra.mxu0 0.0
    %679 = vmatprep.subr.mxu0 0.0
    %680 = vmatpush1.xpose.msra.mxu0 0.0
    %681 = vmatprep.subr.mxu0 0.0
    %682 = vmatpush1.xpose.msra.mxu0 0.0
    %683 = vmatprep.subr.mxu0 0.0
    %684 = vmatpush1.xpose.msra.mxu0 0.0
    %685 = vmatprep.subr.mxu0 0.0
    %686 = vmatpush1.xpose.msra.mxu0 0.0
    %687 = vmatprep.subr.mxu0 0.0
    %688 = vmatpush1.xpose.msra.mxu0 0.0
    %689 = vmatprep.subr.mxu0 0.0
    %690 = vmatpush1.xpose.msra.mxu0 0.0
    %691 = vmatprep.subr.mxu0 0.0
    %692 = vmatpush1.xpose.msra.mxu0 0.0
    %693 = vmatprep.subr.mxu0 0.0
    %694 = vmatpush1.xpose.msra.mxu0 0.0
    %695 = vmatprep.subr.mxu0 0.0
    %696 = vmatpush1.xpose.msra.mxu0 0.0
    %697 = vmatprep.subr.mxu0 0.0
    %698 = vmatpush1.xpose.msra.mxu0 0.0
    %699 = vmatprep.subr.mxu0 0.0
    %700 = vmatpush1.xpose.msra.mxu0 0.0
    %701 = vmatprep.subr.mxu0 0.0
    %702 = vmatpush1.xpose.msra.mxu0 0.0
    %703 = vmatprep.subr.mxu0 0.0
    %704 = vmatpush1.xpose.msra.mxu0 0.0
    %705 = vmatprep.subr.mxu0 0.0
    %706 = vmatpush1.xpose.msra.mxu0 0.0
    %707 = vmatprep.subr.mxu0 0.0
    %708 = vmatpush1.xpose.msra.mxu0 0.0
    %709 = vmatprep.subr.mxu0 0.0
    %710 = vmatpush1.xpose.msra.mxu0 0.0
    %711 = vmatprep.subr.mxu0 0.0
    %712 = vmatpush1.xpose.msra.mxu0 0.0
    %713 = vmatprep.subr.mxu0 0.0
    %714 = vmatpush1.xpose.msra.mxu0 0.0
    %715 = vmatprep.subr.mxu0 0.0
    %716 = vmatpush1.xpose.msra.mxu0 0.0
    %717 = vmatprep.subr.mxu0 0.0
    %718 = vmatpush1.xpose.msra.mxu0 0.0
    %719 = vmatprep.subr.mxu0 0.0
    %720 = vmatpush1.xpose.msra.mxu0 0.0
    %721 = vmatprep.subr.mxu0 0.0
    %722 = vmatpush1.xpose.msra.mxu0 0.0
    %723 = vmatprep.subr.mxu0 0.0
    %724 = vmatpush1.xpose.msra.mxu0 0.0
    %725 = vmatprep.subr.mxu0 0.0
    %726 = vmatpush1.xpose.msra.mxu0 0.0
    %727 = vmatprep.subr.mxu0 0.0
    %728 = vmatpush1.xpose.msra.mxu0 0.0
    %729 = vmatprep.subr.mxu0 0.0
    %730 = vmatpush1.xpose.msra.mxu0 0.0
    %731 = vmatprep.subr.mxu0 0.0
    %732 = vmatpush1.xpose.msra.mxu0 0.0
    %733 = vmatprep.subr.mxu0 0.0
    %734 = vmatpush1.xpose.msra.mxu0 0.0
    %735 = vmatprep.mubr.f32.mxu0 0.0
    %736 = vmatmul.mubr.f32.gmra.mrb[0].mxu0 %v667
    %v737 = vpop.f32.mrb[0].mxu0
    %v738 = vadd.f32 0.0, %v737
    %v739 = vpop.f32.mrb[0].mxu0
    %740 = vdwg.mxu0
    %741 = vrot.lane.b32.xlu0 %v339, 120
    %v742 = vpop.permute.xlu0 %741
    %743 = vrot.lane.b32.xlu0 %v249, 120
    %v744 = vpop.permute.xlu0 %743
    %v745 = vsel %vm340, %v742, 0
    %v747 = vsel %vm340, %v744, 0
    %749 = vmatprep.subr.mxu0 0.0
    %750 = vmatpush1.xpose.msra.mxu0 %v747
    %751 = vmatprep.subr.mxu0 0.0
    %752 = vmatpush1.xpose.msra.mxu0 0.0
    %753 = vmatprep.subr.mxu0 0.0
    %754 = vmatpush1.xpose.msra.mxu0 0.0
    %755 = vmatprep.subr.mxu0 0.0
    %756 = vmatpush1.xpose.msra.mxu0 0.0
    %757 = vmatprep.subr.mxu0 0.0
    %758 = vmatpush1.xpose.msra.mxu0 0.0
    %759 = vmatprep.subr.mxu0 0.0
    %760 = vmatpush1.xpose.msra.mxu0 0.0
    %761 = vmatprep.subr.mxu0 0.0
    %762 = vmatpush1.xpose.msra.mxu0 0.0
    %763 = vmatprep.subr.mxu0 0.0
    %764 = vmatpush1.xpose.msra.mxu0 0.0
    %765 = vmatprep.subr.mxu0 0.0
    %766 = vmatpush1.xpose.msra.mxu0 0.0
    %767 = vmatprep.subr.mxu0 0.0
    %768 = vmatpush1.xpose.msra.mxu0 0.0
    %769 = vmatprep.subr.mxu0 0.0
    %770 = vmatpush1.xpose.msra.mxu0 0.0
    %771 = vmatprep.subr.mxu0 0.0
    %772 = vmatpush1.xpose.msra.mxu0 0.0
    %773 = vmatprep.subr.mxu0 0.0
    %774 = vmatpush1.xpose.msra.mxu0 0.0
    %775 = vmatprep.subr.mxu0 0.0
    %776 = vmatpush1.xpose.msra.mxu0 0.0
    %777 = vmatprep.subr.mxu0 0.0
    %778 = vmatpush1.xpose.msra.mxu0 0.0
    %779 = vmatprep.subr.mxu0 0.0
    %780 = vmatpush1.xpose.msra.mxu0 0.0
    %781 = vmatprep.subr.mxu0 0.0
    %782 = vmatpush1.xpose.msra.mxu0 0.0
    %783 = vmatprep.subr.mxu0 0.0
    %784 = vmatpush1.xpose.msra.mxu0 0.0
    %785 = vmatprep.subr.mxu0 0.0
    %786 = vmatpush1.xpose.msra.mxu0 0.0
    %787 = vmatprep.subr.mxu0 0.0
    %788 = vmatpush1.xpose.msra.mxu0 0.0
    %789 = vmatprep.subr.mxu0 0.0
    %790 = vmatpush1.xpose.msra.mxu0 0.0
    %791 = vmatprep.subr.mxu0 0.0
    %792 = vmatpush1.xpose.msra.mxu0 0.0
    %793 = vmatprep.subr.mxu0 0.0
    %794 = vmatpush1.xpose.msra.mxu0 0.0
    %795 = vmatprep.subr.mxu0 0.0
    %796 = vmatpush1.xpose.msra.mxu0 0.0
    %797 = vmatprep.subr.mxu0 0.0
    %798 = vmatpush1.xpose.msra.mxu0 0.0
    %799 = vmatprep.subr.mxu0 0.0
    %800 = vmatpush1.xpose.msra.mxu0 0.0
    %801 = vmatprep.subr.mxu0 0.0
    %802 = vmatpush1.xpose.msra.mxu0 0.0
    %803 = vmatprep.subr.mxu0 0.0
    %804 = vmatpush1.xpose.msra.mxu0 0.0
    %805 = vmatprep.subr.mxu0 0.0
    %806 = vmatpush1.xpose.msra.mxu0 0.0
    %807 = vmatprep.subr.mxu0 0.0
    %808 = vmatpush1.xpose.msra.mxu0 0.0
    %809 = vmatprep.subr.mxu0 0.0
    %810 = vmatpush1.xpose.msra.mxu0 0.0
    %811 = vmatprep.subr.mxu0 0.0
    %812 = vmatpush1.xpose.msra.mxu0 0.0
    %813 = vmatprep.mubr.f32.mxu0 0.0
    %814 = vmatmul.mubr.f32.gmra.mrb[0].mxu0 %v745
    %v815 = vpop.f32.mrb[0].mxu0
    %v816 = vadd.f32 0.0, %v815
    %v817 = vpop.f32.mrb[0].mxu0
    %818 = vdwg.mxu0
    %v819 = vsel %vm340, %v738, -inf
    %820 = vmax.xlane.f32.xlu0 %v819
    %v821 = vpop.xlane.xlu0 %820
    %v822 = vsel %vm340, %v816, -inf
    %823 = vmax.xlane.f32.xlu0 %v822
    %v824 = vpop.xlane.xlu0 %823
    %v825 = vsub.f32 %v738, %v821
    %v826 = vsub.f32 %v816, %v824
    %v827 = vmul.f32 %v825, 1.442695
    %v828 = vpow.pop %v827
    %v829 = vmul.f32 %v826, 1.442695
    %v830 = vpow.pop %v829
    %v831 = vsel %vm340, %v828, 0.0
    %832 = vadd.xlane.f32.xlu0 %v831
    %v833 = vpop.xlane.xlu0 %832
    %v834 = vsel %vm340, %v830, 0.0
    %835 = vadd.xlane.f32.xlu0 %v834
    %v836 = vpop.xlane.xlu0 %835
    %v837 = vrcp.pop %v833
    %v838 = vrcp.pop %v836
    %v839 = vmul.f32 %v828, %v837
    %v840 = vmul.f32 %v830, %v838
    %842 = vrot.lane.b32.xlu0 %v330, 120
    %v843 = vpop.permute.xlu0 %842
    %v846 = vsel %vm340, %v839, 0
    %848 = vmatprep.subr.mxu0 0.0
    %849 = vmatpush1.msra.mxu0 %v843
    %850 = vmatprep.subr.mxu0 0.0
    %851 = vmatpush1.msra.mxu0 0.0
    %852 = vmatprep.subr.mxu0 0.0
    %853 = vmatpush1.msra.mxu0 0.0
    %854 = vmatprep.subr.mxu0 0.0
    %855 = vmatpush1.msra.mxu0 0.0
    %856 = vmatprep.subr.mxu0 0.0
    %857 = vmatpush1.msra.mxu0 0.0
    %858 = vmatprep.subr.mxu0 0.0
    %859 = vmatpush1.msra.mxu0 0.0
    %860 = vmatprep.subr.mxu0 0.0
    %861 = vmatpush1.msra.mxu0 0.0
    %862 = vmatprep.subr.mxu0 0.0
    %863 = vmatpush1.msra.mxu0 0.0
    %864 = vmatprep.subr.mxu0 0.0
    %865 = vmatpush1.msra.mxu0 0.0
    %866 = vmatprep.subr.mxu0 0.0
    %867 = vmatpush1.msra.mxu0 0.0
    %868 = vmatprep.subr.mxu0 0.0
    %869 = vmatpush1.msra.mxu0 0.0
    %870 = vmatprep.subr.mxu0 0.0
    %871 = vmatpush1.msra.mxu0 0.0
    %872 = vmatprep.subr.mxu0 0.0
    %873 = vmatpush1.msra.mxu0 0.0
    %874 = vmatprep.subr.mxu0 0.0
    %875 = vmatpush1.msra.mxu0 0.0
    %876 = vmatprep.subr.mxu0 0.0
    %877 = vmatpush1.msra.mxu0 0.0
    %878 = vmatprep.subr.mxu0 0.0
    %879 = vmatpush1.msra.mxu0 0.0
    %880 = vmatprep.subr.mxu0 0.0
    %881 = vmatpush1.msra.mxu0 0.0
    %882 = vmatprep.subr.mxu0 0.0
    %883 = vmatpush1.msra.mxu0 0.0
    %884 = vmatprep.subr.mxu0 0.0
    %885 = vmatpush1.msra.mxu0 0.0
    %886 = vmatprep.subr.mxu0 0.0
    %887 = vmatpush1.msra.mxu0 0.0
    %888 = vmatprep.subr.mxu0 0.0
    %889 = vmatpush1.msra.mxu0 0.0
    %890 = vmatprep.subr.mxu0 0.0
    %891 = vmatpush1.msra.mxu0 0.0
    %892 = vmatprep.subr.mxu0 0.0
    %893 = vmatpush1.msra.mxu0 0.0
    %894 = vmatprep.subr.mxu0 0.0
    %895 = vmatpush1.msra.mxu0 0.0
    %896 = vmatprep.subr.mxu0 0.0
    %897 = vmatpush1.msra.mxu0 0.0
    %898 = vmatprep.subr.mxu0 0.0
    %899 = vmatpush1.msra.mxu0 0.0
    %900 = vmatprep.subr.mxu0 0.0
    %901 = vmatpush1.msra.mxu0 0.0
    %902 = vmatprep.subr.mxu0 0.0
    %903 = vmatpush1.msra.mxu0 0.0
    %904 = vmatprep.subr.mxu0 0.0
    %905 = vmatpush1.msra.mxu0 0.0
    %906 = vmatprep.subr.mxu0 0.0
    %907 = vmatpush1.msra.mxu0 0.0
    %908 = vmatprep.subr.mxu0 0.0
    %909 = vmatpush1.msra.mxu0 0.0
    %910 = vmatprep.subr.mxu0 0.0
    %911 = vmatpush1.msra.mxu0 0.0
    %912 = vmatprep.mubr.f32.mxu0 0.0
    %913 = vmatmul.mubr.f32.gmra.mrb[0].mxu0 %v846
    %v914 = vpop.f32.mrb[0].mxu0
    %v915 = vadd.f32 0.0, %v914
    %v916 = vpop.f32.mrb[0].mxu0
    %917 = vdwg.mxu0
    %919 = vrot.lane.b32.xlu0 %v335, 120
    %v920 = vpop.permute.xlu0 %919
    %v923 = vsel %vm340, %v840, 0
    %925 = vmatprep.subr.mxu0 0.0
    %926 = vmatpush1.msra.mxu0 %v920
    %927 = vmatprep.subr.mxu0 0.0
    %928 = vmatpush1.msra.mxu0 0.0
    %929 = vmatprep.subr.mxu0 0.0
    %930 = vmatpush1.msra.mxu0 0.0
    %931 = vmatprep.subr.mxu0 0.0
    %932 = vmatpush1.msra.mxu0 0.0
    %933 = vmatprep.subr.mxu0 0.0
    %934 = vmatpush1.msra.mxu0 0.0
    %935 = vmatprep.subr.mxu0 0.0
    %936 = vmatpush1.msra.mxu0 0.0
    %937 = vmatprep.subr.mxu0 0.0
    %938 = vmatpush1.msra.mxu0 0.0
    %939 = vmatprep.subr.mxu0 0.0
    %940 = vmatpush1.msra.mxu0 0.0
    %941 = vmatprep.subr.mxu0 0.0
    %942 = vmatpush1.msra.mxu0 0.0
    %943 = vmatprep.subr.mxu0 0.0
    %944 = vmatpush1.msra.mxu0 0.0
    %945 = vmatprep.subr.mxu0 0.0
    %946 = vmatpush1.msra.mxu0 0.0
    %947 = vmatprep.subr.mxu0 0.0
    %948 = vmatpush1.msra.mxu0 0.0
    %949 = vmatprep.subr.mxu0 0.0
    %950 = vmatpush1.msra.mxu0 0.0
    %951 = vmatprep.subr.mxu0 0.0
    %952 = vmatpush1.msra.mxu0 0.0
    %953 = vmatprep.subr.mxu0 0.0
    %954 = vmatpush1.msra.mxu0 0.0
    %955 = vmatprep.subr.mxu0 0.0
    %956 = vmatpush1.msra.mxu0 0.0
    %957 = vmatprep.subr.mxu0 0.0
    %958 = vmatpush1.msra.mxu0 0.0
    %959 = vmatprep.subr.mxu0 0.0
    %960 = vmatpush1.msra.mxu0 0.0
    %961 = vmatprep.subr.mxu0 0.0
    %962 = vmatpush1.msra.mxu0 0.0
    %963 = vmatprep.subr.mxu0 0.0
    %964 = vmatpush1.msra.mxu0 0.0
    %965 = vmatprep.subr.mxu0 0.0
    %966 = vmatpush1.msra.mxu0 0.0
    %967 = vmatprep.subr.mxu0 0.0
    %968 = vmatpush1.msra.mxu0 0.0
    %969 = vmatprep.subr.mxu0 0.0
    %970 = vmatpush1.msra.mxu0 0.0
    %971 = vmatprep.subr.mxu0 0.0
    %972 = vmatpush1.msra.mxu0 0.0
    %973 = vmatprep.subr.mxu0 0.0
    %974 = vmatpush1.msra.mxu0 0.0
    %975 = vmatprep.subr.mxu0 0.0
    %976 = vmatpush1.msra.mxu0 0.0
    %977 = vmatprep.subr.mxu0 0.0
    %978 = vmatpush1.msra.mxu0 0.0
    %979 = vmatprep.subr.mxu0 0.0
    %980 = vmatpush1.msra.mxu0 0.0
    %981 = vmatprep.subr.mxu0 0.0
    %982 = vmatpush1.msra.mxu0 0.0
    %983 = vmatprep.subr.mxu0 0.0
    %984 = vmatpush1.msra.mxu0 0.0
    %985 = vmatprep.subr.mxu0 0.0
    %986 = vmatpush1.msra.mxu0 0.0
    %987 = vmatprep.subr.mxu0 0.0
    %988 = vmatpush1.msra.mxu0 0.0
    %989 = vmatprep.mubr.f32.mxu0 0.0
    %990 = vmatmul.mubr.f32.gmra.mrb[0].mxu0 %v923
    %v991 = vpop.f32.mrb[0].mxu0
    %v992 = vadd.f32 0.0, %v991
    %v993 = vpop.f32.mrb[0].mxu0
    %994 = vdwg.mxu0
    %997 = vrot.lane.b32.xlu0 %v915, 8
    %v998 = vpop.permute.xlu0 %997
    %999 = vrot.lane.b32.xlu0 %v992, 8
    %v1000 = vpop.permute.xlu0 %999
    %vm1003 = vcmask 130112
    %1004 = vst.msk [vmem:[#allocation2] sm:$0xff] %vm1003, %v998
    %1005 = vst.msk [vmem:[#allocation2 + $0x8] sm:$0xff] %vm1003, %v1000
    %1006 = vrot.lane.b32.xlu0 %v338, 112
    %v1007 = vpop.permute.xlu0 %1006
    %1008 = vrot.lane.b32.xlu0 %v244, 112
    %v1009 = vpop.permute.xlu0 %1008
    %v1010 = vsel %vm340, %v1007, 0
    %v1012 = vsel %vm340, %v1009, 0
    %1014 = vmatprep.subr.mxu0 0.0
    %1015 = vmatpush1.xpose.msra.mxu0 %v1012
    %1016 = vmatprep.subr.mxu0 0.0
    %1017 = vmatpush1.xpose.msra.mxu0 0.0
    %1018 = vmatprep.subr.mxu0 0.0
    %1019 = vmatpush1.xpose.msra.mxu0 0.0
    %1020 = vmatprep.subr.mxu0 0.0
    %1021 = vmatpush1.xpose.msra.mxu0 0.0
    %1022 = vmatprep.subr.mxu0 0.0
    %1023 = vmatpush1.xpose.msra.mxu0 0.0
    %1024 = vmatprep.subr.mxu0 0.0
    %1025 = vmatpush1.xpose.msra.mxu0 0.0
    %1026 = vmatprep.subr.mxu0 0.0
    %1027 = vmatpush1.xpose.msra.mxu0 0.0
    %1028 = vmatprep.subr.mxu0 0.0
    %1029 = vmatpush1.xpose.msra.mxu0 0.0
    %1030 = vmatprep.subr.mxu0 0.0
    %1031 = vmatpush1.xpose.msra.mxu0 0.0
    %1032 = vmatprep.subr.mxu0 0.0
    %1033 = vmatpush1.xpose.msra.mxu0 0.0
    %1034 = vmatprep.subr.mxu0 0.0
    %1035 = vmatpush1.xpose.msra.mxu0 0.0
    %1036 = vmatprep.subr.mxu0 0.0
    %1037 = vmatpush1.xpose.msra.mxu0 0.0
    %1038 = vmatprep.subr.mxu0 0.0
    %1039 = vmatpush1.xpose.msra.mxu0 0.0
    %1040 = vmatprep.subr.mxu0 0.0
    %1041 = vmatpush1.xpose.msra.mxu0 0.0
    %1042 = vmatprep.subr.mxu0 0.0
    %1043 = vmatpush1.xpose.msra.mxu0 0.0
    %1044 = vmatprep.subr.mxu0 0.0
    %1045 = vmatpush1.xpose.msra.mxu0 0.0
    %1046 = vmatprep.subr.mxu0 0.0
    %1047 = vmatpush1.xpose.msra.mxu0 0.0
    %1048 = vmatprep.subr.mxu0 0.0
    %1049 = vmatpush1.xpose.msra.mxu0 0.0
    %1050 = vmatprep.subr.mxu0 0.0
    %1051 = vmatpush1.xpose.msra.mxu0 0.0
    %1052 = vmatprep.subr.mxu0 0.0
    %1053 = vmatpush1.xpose.msra.mxu0 0.0
    %1054 = vmatprep.subr.mxu0 0.0
    %1055 = vmatpush1.xpose.msra.mxu0 0.0
    %1056 = vmatprep.subr.mxu0 0.0
    %1057 = vmatpush1.xpose.msra.mxu0 0.0
    %1058 = vmatprep.subr.mxu0 0.0
    %1059 = vmatpush1.xpose.msra.mxu0 0.0
    %1060 = vmatprep.subr.mxu0 0.0
    %1061 = vmatpush1.xpose.msra.mxu0 0.0
    %1062 = vmatprep.subr.mxu0 0.0
    %1063 = vmatpush1.xpose.msra.mxu0 0.0
    %1064 = vmatprep.subr.mxu0 0.0
    %1065 = vmatpush1.xpose.msra.mxu0 0.0
    %1066 = vmatprep.subr.mxu0 0.0
    %1067 = vmatpush1.xpose.msra.mxu0 0.0
    %1068 = vmatprep.subr.mxu0 0.0
    %1069 = vmatpush1.xpose.msra.mxu0 0.0
    %1070 = vmatprep.subr.mxu0 0.0
    %1071 = vmatpush1.xpose.msra.mxu0 0.0
    %1072 = vmatprep.subr.mxu0 0.0
    %1073 = vmatpush1.xpose.msra.mxu0 0.0
    %1074 = vmatprep.subr.mxu0 0.0
    %1075 = vmatpush1.xpose.msra.mxu0 0.0
    %1076 = vmatprep.subr.mxu0 0.0
    %1077 = vmatpush1.xpose.msra.mxu0 0.0
    %1078 = vmatprep.mubr.f32.mxu0 0.0
    %1079 = vmatmul.mubr.f32.gmra.mrb[0].mxu0 %v1010
    %v1080 = vpop.f32.mrb[0].mxu0
    %v1081 = vadd.f32 0.0, %v1080
    %v1082 = vpop.f32.mrb[0].mxu0
    %1083 = vdwg.mxu0
    %1084 = vrot.lane.b32.xlu0 %v339, 112
    %v1085 = vpop.permute.xlu0 %1084
    %1086 = vrot.lane.b32.xlu0 %v249, 112
    %v1087 = vpop.permute.xlu0 %1086
    %v1088 = vsel %vm340, %v1085, 0
    %v1090 = vsel %vm340, %v1087, 0
    %1092 = vmatprep.subr.mxu0 0.0
    %1093 = vmatpush1.xpose.msra.mxu0 %v1090
    %1094 = vmatprep.subr.mxu0 0.0
    %1095 = vmatpush1.xpose.msra.mxu0 0.0
    %1096 = vmatprep.subr.mxu0 0.0
    %1097 = vmatpush1.xpose.msra.mxu0 0.0
    %1098 = vmatprep.subr.mxu0 0.0
    %1099 = vmatpush1.xpose.msra.mxu0 0.0
    %1100 = vmatprep.subr.mxu0 0.0
    %1101 = vmatpush1.xpose.msra.mxu0 0.0
    %1102 = vmatprep.subr.mxu0 0.0
    %1103 = vmatpush1.xpose.msra.mxu0 0.0
    %1104 = vmatprep.subr.mxu0 0.0
    %1105 = vmatpush1.xpose.msra.mxu0 0.0
    %1106 = vmatprep.subr.mxu0 0.0
    %1107 = vmatpush1.xpose.msra.mxu0 0.0
    %1108 = vmatprep.subr.mxu0 0.0
    %1109 = vmatpush1.xpose.msra.mxu0 0.0
    %1110 = vmatprep.subr.mxu0 0.0
    %1111 = vmatpush1.xpose.msra.mxu0 0.0
    %1112 = vmatprep.subr.mxu0 0.0
    %1113 = vmatpush1.xpose.msra.mxu0 0.0
    %1114 = vmatprep.subr.mxu0 0.0
    %1115 = vmatpush1.xpose.msra.mxu0 0.0
    %1116 = vmatprep.subr.mxu0 0.0
    %1117 = vmatpush1.xpose.msra.mxu0 0.0
    %1118 = vmatprep.subr.mxu0 0.0
    %1119 = vmatpush1.xpose.msra.mxu0 0.0
    %1120 = vmatprep.subr.mxu0 0.0
    %1121 = vmatpush1.xpose.msra.mxu0 0.0
    %1122 = vmatprep.subr.mxu0 0.0
    %1123 = vmatpush1.xpose.msra.mxu0 0.0
    %1124 = vmatprep.subr.mxu0 0.0
    %1125 = vmatpush1.xpose.msra.mxu0 0.0
    %1126 = vmatprep.subr.mxu0 0.0
    %1127 = vmatpush1.xpose.msra.mxu0 0.0
    %1128 = vmatprep.subr.mxu0 0.0
    %1129 = vmatpush1.xpose.msra.mxu0 0.0
    %1130 = vmatprep.subr.mxu0 0.0
    %1131 = vmatpush1.xpose.msra.mxu0 0.0
    %1132 = vmatprep.subr.mxu0 0.0
    %1133 = vmatpush1.xpose.msra.mxu0 0.0
    %1134 = vmatprep.subr.mxu0 0.0
    %1135 = vmatpush1.xpose.msra.mxu0 0.0
    %1136 = vmatprep.subr.mxu0 0.0
    %1137 = vmatpush1.xpose.msra.mxu0 0.0
    %1138 = vmatprep.subr.mxu0 0.0
    %1139 = vmatpush1.xpose.msra.mxu0 0.0
    %1140 = vmatprep.subr.mxu0 0.0
    %1141 = vmatpush1.xpose.msra.mxu0 0.0
    %1142 = vmatprep.subr.mxu0 0.0
    %1143 = vmatpush1.xpose.msra.mxu0 0.0
    %1144 = vmatprep.subr.mxu0 0.0
    %1145 = vmatpush1.xpose.msra.mxu0 0.0
    %1146 = vmatprep.subr.mxu0 0.0
    %1147 = vmatpush1.xpose.msra.mxu0 0.0
    %1148 = vmatprep.subr.mxu0 0.0
    %1149 = vmatpush1.xpose.msra.mxu0 0.0
    %1150 = vmatprep.subr.mxu0 0.0
    %1151 = vmatpush1.xpose.msra.mxu0 0.0
    %1152 = vmatprep.subr.mxu0 0.0
    %1153 = vmatpush1.xpose.msra.mxu0 0.0
    %1154 = vmatprep.subr.mxu0 0.0
    %1155 = vmatpush1.xpose.msra.mxu0 0.0
    %1156 = vmatprep.mubr.f32.mxu0 0.0
    %1157 = vmatmul.mubr.f32.gmra.mrb[0].mxu0 %v1088
    %v1158 = vpop.f32.mrb[0].mxu0
    %v1159 = vadd.f32 0.0, %v1158
    %v1160 = vpop.f32.mrb[0].mxu0
    %1161 = vdwg.mxu0
    %v1162 = vsel %vm340, %v1081, -inf
    %1163 = vmax.xlane.f32.xlu0 %v1162
    %v1164 = vpop.xlane.xlu0 %1163
    %v1165 = vsel %vm340, %v1159, -inf
    %1166 = vmax.xlane.f32.xlu0 %v1165
    %v1167 = vpop.xlane.xlu0 %1166
    %v1168 = vsub.f32 %v1081, %v1164
    %v1169 = vsub.f32 %v1159, %v1167
    %v1170 = vmul.f32 %v1168, 1.442695
    %v1171 = vpow.pop %v1170
    %v1172 = vmul.f32 %v1169, 1.442695
    %v1173 = vpow.pop %v1172
    %v1174 = vsel %vm340, %v1171, 0.0
    %1175 = vadd.xlane.f32.xlu0 %v1174
    %v1176 = vpop.xlane.xlu0 %1175
    %v1177 = vsel %vm340, %v1173, 0.0
    %1178 = vadd.xlane.f32.xlu0 %v1177
    %v1179 = vpop.xlane.xlu0 %1178
    %v1180 = vrcp.pop %v1176
    %v1181 = vrcp.pop %v1179
    %v1182 = vmul.f32 %v1171, %v1180
    %v1183 = vmul.f32 %v1173, %v1181
    %1184 = vrot.lane.b32.xlu0 %v330, 112
    %v1185 = vpop.permute.xlu0 %1184
    %v1188 = vsel %vm340, %v1182, 0
    %1190 = vmatprep.subr.mxu0 0.0
    %1191 = vmatpush1.msra.mxu0 %v1185
    %1192 = vmatprep.subr.mxu0 0.0
    %1193 = vmatpush1.msra.mxu0 0.0
    %1194 = vmatprep.subr.mxu0 0.0
    %1195 = vmatpush1.msra.mxu0 0.0
    %1196 = vmatprep.subr.mxu0 0.0
    %1197 = vmatpush1.msra.mxu0 0.0
    %1198 = vmatprep.subr.mxu0 0.0
    %1199 = vmatpush1.msra.mxu0 0.0
    %1200 = vmatprep.subr.mxu0 0.0
    %1201 = vmatpush1.msra.mxu0 0.0
    %1202 = vmatprep.subr.mxu0 0.0
    %1203 = vmatpush1.msra.mxu0 0.0
    %1204 = vmatprep.subr.mxu0 0.0
    %1205 = vmatpush1.msra.mxu0 0.0
    %1206 = vmatprep.subr.mxu0 0.0
    %1207 = vmatpush1.msra.mxu0 0.0
    %1208 = vmatprep.subr.mxu0 0.0
    %1209 = vmatpush1.msra.mxu0 0.0
    %1210 = vmatprep.subr.mxu0 0.0
    %1211 = vmatpush1.msra.mxu0 0.0
    %1212 = vmatprep.subr.mxu0 0.0
    %1213 = vmatpush1.msra.mxu0 0.0
    %1214 = vmatprep.subr.mxu0 0.0
    %1215 = vmatpush1.msra.mxu0 0.0
    %1216 = vmatprep.subr.mxu0 0.0
    %1217 = vmatpush1.msra.mxu0 0.0
    %1218 = vmatprep.subr.mxu0 0.0
    %1219 = vmatpush1.msra.mxu0 0.0
    %1220 = vmatprep.subr.mxu0 0.0
    %1221 = vmatpush1.msra.mxu0 0.0
    %1222 = vmatprep.subr.mxu0 0.0
    %1223 = vmatpush1.msra.mxu0 0.0
    %1224 = vmatprep.subr.mxu0 0.0
    %1225 = vmatpush1.msra.mxu0 0.0
    %1226 = vmatprep.subr.mxu0 0.0
    %1227 = vmatpush1.msra.mxu0 0.0
    %1228 = vmatprep.subr.mxu0 0.0
    %1229 = vmatpush1.msra.mxu0 0.0
    %1230 = vmatprep.subr.mxu0 0.0
    %1231 = vmatpush1.msra.mxu0 0.0
    %1232 = vmatprep.subr.mxu0 0.0
    %1233 = vmatpush1.msra.mxu0 0.0
    %1234 = vmatprep.subr.mxu0 0.0
    %1235 = vmatpush1.msra.mxu0 0.0
    %1236 = vmatprep.subr.mxu0 0.0
    %1237 = vmatpush1.msra.mxu0 0.0
    %1238 = vmatprep.subr.mxu0 0.0
    %1239 = vmatpush1.msra.mxu0 0.0
    %1240 = vmatprep.subr.mxu0 0.0
    %1241 = vmatpush1.msra.mxu0 0.0
    %1242 = vmatprep.subr.mxu0 0.0
    %1243 = vmatpush1.msra.mxu0 0.0
    %1244 = vmatprep.subr.mxu0 0.0
    %1245 = vmatpush1.msra.mxu0 0.0
    %1246 = vmatprep.subr.mxu0 0.0
    %1247 = vmatpush1.msra.mxu0 0.0
    %1248 = vmatprep.subr.mxu0 0.0
    %1249 = vmatpush1.msra.mxu0 0.0
    %1250 = vmatprep.subr.mxu0 0.0
    %1251 = vmatpush1.msra.mxu0 0.0
    %1252 = vmatprep.subr.mxu0 0.0
    %1253 = vmatpush1.msra.mxu0 0.0
    %1254 = vmatprep.mubr.f32.mxu0 0.0
    %1255 = vmatmul.mubr.f32.gmra.mrb[0].mxu0 %v1188
    %v1256 = vpop.f32.mrb[0].mxu0
    %v1257 = vadd.f32 0.0, %v1256
    %v1258 = vpop.f32.mrb[0].mxu0
    %1259 = vdwg.mxu0
    %1260 = vrot.lane.b32.xlu0 %v335, 112
    %v1261 = vpop.permute.xlu0 %1260
    %v1264 = vsel %vm340, %v1183, 0
    %1266 = vmatprep.subr.mxu0 0.0
    %1267 = vmatpush1.msra.mxu0 %v1261
    %1268 = vmatprep.subr.mxu0 0.0
    %1269 = vmatpush1.msra.mxu0 0.0
    %1270 = vmatprep.subr.mxu0 0.0
    %1271 = vmatpush1.msra.mxu0 0.0
    %1272 = vmatprep.subr.mxu0 0.0
    %1273 = vmatpush1.msra.mxu0 0.0
    %1274 = vmatprep.subr.mxu0 0.0
    %1275 = vmatpush1.msra.mxu0 0.0
    %1276 = vmatprep.subr.mxu0 0.0
    %1277 = vmatpush1.msra.mxu0 0.0
    %1278 = vmatprep.subr.mxu0 0.0
    %1279 = vmatpush1.msra.mxu0 0.0
    %1280 = vmatprep.subr.mxu0 0.0
    %1281 = vmatpush1.msra.mxu0 0.0
    %1282 = vmatprep.subr.mxu0 0.0
    %1283 = vmatpush1.msra.mxu0 0.0
    %1284 = vmatprep.subr.mxu0 0.0
    %1285 = vmatpush1.msra.mxu0 0.0
    %1286 = vmatprep.subr.mxu0 0.0
    %1287 = vmatpush1.msra.mxu0 0.0
    %1288 = vmatprep.subr.mxu0 0.0
    %1289 = vmatpush1.msra.mxu0 0.0
    %1290 = vmatprep.subr.mxu0 0.0
    %1291 = vmatpush1.msra.mxu0 0.0
    %1292 = vmatprep.subr.mxu0 0.0
    %1293 = vmatpush1.msra.mxu0 0.0
    %1294 = vmatprep.subr.mxu0 0.0
    %1295 = vmatpush1.msra.mxu0 0.0
    %1296 = vmatprep.subr.mxu0 0.0
    %1297 = vmatpush1.msra.mxu0 0.0
    %1298 = vmatprep.subr.mxu0 0.0
    %1299 = vmatpush1.msra.mxu0 0.0
    %1300 = vmatprep.subr.mxu0 0.0
    %1301 = vmatpush1.msra.mxu0 0.0
    %1302 = vmatprep.subr.mxu0 0.0
    %1303 = vmatpush1.msra.mxu0 0.0
    %1304 = vmatprep.subr.mxu0 0.0
    %1305 = vmatpush1.msra.mxu0 0.0
    %1306 = vmatprep.subr.mxu0 0.0
    %1307 = vmatpush1.msra.mxu0 0.0
    %1308 = vmatprep.subr.mxu0 0.0
    %1309 = vmatpush1.msra.mxu0 0.0
    %1310 = vmatprep.subr.mxu0 0.0
    %1311 = vmatpush1.msra.mxu0 0.0
    %1312 = vmatprep.subr.mxu0 0.0
    %1313 = vmatpush1.msra.mxu0 0.0
    %1314 = vmatprep.subr.mxu0 0.0
    %1315 = vmatpush1.msra.mxu0 0.0
    %1316 = vmatprep.subr.mxu0 0.0
    %1317 = vmatpush1.msra.mxu0 0.0
    %1318 = vmatprep.subr.mxu0 0.0
    %1319 = vmatpush1.msra.mxu0 0.0
    %1320 = vmatprep.subr.mxu0 0.0
    %1321 = vmatpush1.msra.mxu0 0.0
    %1322 = vmatprep.subr.mxu0 0.0
    %1323 = vmatpush1.msra.mxu0 0.0
    %1324 = vmatprep.subr.mxu0 0.0
    %1325 = vmatpush1.msra.mxu0 0.0
    %1326 = vmatprep.subr.mxu0 0.0
    %1327 = vmatpush1.msra.mxu0 0.0
    %1328 = vmatprep.subr.mxu0 0.0
    %1329 = vmatpush1.msra.mxu0 0.0
    %1330 = vmatprep.mubr.f32.mxu0 0.0
    %1331 = vmatmul.mubr.f32.gmra.mrb[0].mxu0 %v1264
    %v1332 = vpop.f32.mrb[0].mxu0
    %v1333 = vadd.f32 0.0, %v1332
    %v1334 = vpop.f32.mrb[0].mxu0
    %1335 = vdwg.mxu0
    %1338 = vrot.lane.b32.xlu0 %v1257, 16
    %v1339 = vpop.permute.xlu0 %1338
    %1340 = vrot.lane.b32.xlu0 %v1333, 16
    %v1341 = vpop.permute.xlu0 %1340
    %vm1344 = vcmask 195712
    %1345 = vst.msk [vmem:[#allocation2] sm:$0xff] %vm1344, %v1339
    %1346 = vst.msk [vmem:[#allocation2 + $0x8] sm:$0xff] %vm1344, %v1341
    %1347 = vrot.lane.b32.xlu0 %v338, 104
    %v1348 = vpop.permute.xlu0 %1347
    %1349 = vrot.lane.b32.xlu0 %v244, 104
    %v1350 = vpop.permute.xlu0 %1349
    %v1351 = vsel %vm340, %v1348, 0
    %v1353 = vsel %vm340, %v1350, 0
    %1355 = vmatprep.subr.mxu0 0.0
    %1356 = vmatpush1.xpose.msra.mxu0 %v1353
    %1357 = vmatprep.subr.mxu0 0.0
    %1358 = vmatpush1.xpose.msra.mxu0 0.0
    %1359 = vmatprep.subr.mxu0 0.0
    %1360 = vmatpush1.xpose.msra.mxu0 0.0
    %1361 = vmatprep.subr.mxu0 0.0
    %1362 = vmatpush1.xpose.msra.mxu0 0.0
    %1363 = vmatprep.subr.mxu0 0.0
    %1364 = vmatpush1.xpose.msra.mxu0 0.0
    %1365 = vmatprep.subr.mxu0 0.0
    %1366 = vmatpush1.xpose.msra.mxu0 0.0
    %1367 = vmatprep.subr.mxu0 0.0
    %1368 = vmatpush1.xpose.msra.mxu0 0.0
    %1369 = vmatprep.subr.mxu0 0.0
    %1370 = vmatpush1.xpose.msra.mxu0 0.0
    %1371 = vmatprep.subr.mxu0 0.0
    %1372 = vmatpush1.xpose.msra.mxu0 0.0
    %1373 = vmatprep.subr.mxu0 0.0
    %1374 = vmatpush1.xpose.msra.mxu0 0.0
    %1375 = vmatprep.subr.mxu0 0.0
    %1376 = vmatpush1.xpose.msra.mxu0 0.0
    %1377 = vmatprep.subr.mxu0 0.0
    %1378 = vmatpush1.xpose.msra.mxu0 0.0
    %1379 = vmatprep.subr.mxu0 0.0
    %1380 = vmatpush1.xpose.msra.mxu0 0.0
    %1381 = vmatprep.subr.mxu0 0.0
    %1382 = vmatpush1.xpose.msra.mxu0 0.0
    %1383 = vmatprep.subr.mxu0 0.0
    %1384 = vmatpush1.xpose.msra.mxu0 0.0
    %1385 = vmatprep.subr.mxu0 0.0
    %1386 = vmatpush1.xpose.msra.mxu0 0.0
    %1387 = vmatprep.subr.mxu0 0.0
    %1388 = vmatpush1.xpose.msra.mxu0 0.0
    %1389 = vmatprep.subr.mxu0 0.0
    %1390 = vmatpush1.xpose.msra.mxu0 0.0
    %1391 = vmatprep.subr.mxu0 0.0
    %1392 = vmatpush1.xpose.msra.mxu0 0.0
    %1393 = vmatprep.subr.mxu0 0.0
    %1394 = vmatpush1.xpose.msra.mxu0 0.0
    %1395 = vmatprep.subr.mxu0 0.0
    %1396 = vmatpush1.xpose.msra.mxu0 0.0
    %1397 = vmatprep.subr.mxu0 0.0
    %1398 = vmatpush1.xpose.msra.mxu0 0.0
    %1399 = vmatprep.subr.mxu0 0.0
    %1400 = vmatpush1.xpose.msra.mxu0 0.0
    %1401 = vmatprep.subr.mxu0 0.0
    %1402 = vmatpush1.xpose.msra.mxu0 0.0
    %1403 = vmatprep.subr.mxu0 0.0
    %1404 = vmatpush1.xpose.msra.mxu0 0.0
    %1405 = vmatprep.subr.mxu0 0.0
    %1406 = vmatpush1.xpose.msra.mxu0 0.0
    %1407 = vmatprep.subr.mxu0 0.0
    %1408 = vmatpush1.xpose.msra.mxu0 0.0
    %1409 = vmatprep.subr.mxu0 0.0
    %1410 = vmatpush1.xpose.msra.mxu0 0.0
    %1411 = vmatprep.subr.mxu0 0.0
    %1412 = vmatpush1.xpose.msra.mxu0 0.0
    %1413 = vmatprep.subr.mxu0 0.0
    %1414 = vmatpush1.xpose.msra.mxu0 0.0
    %1415 = vmatprep.subr.mxu0 0.0
    %1416 = vmatpush1.xpose.msra.mxu0 0.0
    %1417 = vmatprep.subr.mxu0 0.0
    %1418 = vmatpush1.xpose.msra.mxu0 0.0
    %1419 = vmatprep.mubr.f32.mxu0 0.0
    %1420 = vmatmul.mubr.f32.gmra.mrb[0].mxu0 %v1351
    %v1421 = vpop.f32.mrb[0].mxu0
    %v1422 = vadd.f32 0.0, %v1421
    %v1423 = vpop.f32.mrb[0].mxu0
    %1424 = vdwg.mxu0
    %1425 = vrot.lane.b32.xlu0 %v339, 104
    %v1426 = vpop.permute.xlu0 %1425
    %1427 = vrot.lane.b32.xlu0 %v249, 104
    %v1428 = vpop.permute.xlu0 %1427
    %v1429 = vsel %vm340, %v1426, 0
    %v1431 = vsel %vm340, %v1428, 0
    %1433 = vmatprep.subr.mxu0 0.0
    %1434 = vmatpush1.xpose.msra.mxu0 %v1431
    %1435 = vmatprep.subr.mxu0 0.0
    %1436 = vmatpush1.xpose.msra.mxu0 0.0
    %1437 = vmatprep.subr.mxu0 0.0
    %1438 = vmatpush1.xpose.msra.mxu0 0.0
    %1439 = vmatprep.subr.mxu0 0.0
    %1440 = vmatpush1.xpose.msra.mxu0 0.0
    %1441 = vmatprep.subr.mxu0 0.0
    %1442 = vmatpush1.xpose.msra.mxu0 0.0
    %1443 = vmatprep.subr.mxu0 0.0
    %1444 = vmatpush1.xpose.msra.mxu0 0.0
    %1445 = vmatprep.subr.mxu0 0.0
    %1446 = vmatpush1.xpose.msra.mxu0 0.0
    %1447 = vmatprep.subr.mxu0 0.0
    %1448 = vmatpush1.xpose.msra.mxu0 0.0
    %1449 = vmatprep.subr.mxu0 0.0
    %1450 = vmatpush1.xpose.msra.mxu0 0.0
    %1451 = vmatprep.subr.mxu0 0.0
    %1452 = vmatpush1.xpose.msra.mxu0 0.0
    %1453 = vmatprep.subr.mxu0 0.0
    %1454 = vmatpush1.xpose.msra.mxu0 0.0
    %1455 = vmatprep.subr.mxu0 0.0
    %1456 = vmatpush1.xpose.msra.mxu0 0.0
    %1457 = vmatprep.subr.mxu0 0.0
    %1458 = vmatpush1.xpose.msra.mxu0 0.0
    %1459 = vmatprep.subr.mxu0 0.0
    %1460 = vmatpush1.xpose.msra.mxu0 0.0
    %1461 = vmatprep.subr.mxu0 0.0
    %1462 = vmatpush1.xpose.msra.mxu0 0.0
    %1463 = vmatprep.subr.mxu0 0.0
    %1464 = vmatpush1.xpose.msra.mxu0 0.0
    %1465 = vmatprep.subr.mxu0 0.0
    %1466 = vmatpush1.xpose.msra.mxu0 0.0
    %1467 = vmatprep.subr.mxu0 0.0
    %1468 = vmatpush1.xpose.msra.mxu0 0.0
    %1469 = vmatprep.subr.mxu0 0.0
    %1470 = vmatpush1.xpose.msra.mxu0 0.0
    %1471 = vmatprep.subr.mxu0 0.0
    %1472 = vmatpush1.xpose.msra.mxu0 0.0
    %1473 = vmatprep.subr.mxu0 0.0
    %1474 = vmatpush1.xpose.msra.mxu0 0.0
    %1475 = vmatprep.subr.mxu0 0.0
    %1476 = vmatpush1.xpose.msra.mxu0 0.0
    %1477 = vmatprep.subr.mxu0 0.0
    %1478 = vmatpush1.xpose.msra.mxu0 0.0
    %1479 = vmatprep.subr.mxu0 0.0
    %1480 = vmatpush1.xpose.msra.mxu0 0.0
    %1481 = vmatprep.subr.mxu0 0.0
    %1482 = vmatpush1.xpose.msra.mxu0 0.0
    %1483 = vmatprep.subr.mxu0 0.0
    %1484 = vmatpush1.xpose.msra.mxu0 0.0
    %1485 = vmatprep.subr.mxu0 0.0
    %1486 = vmatpush1.xpose.msra.mxu0 0.0
    %1487 = vmatprep.subr.mxu0 0.0
    %1488 = vmatpush1.xpose.msra.mxu0 0.0
    %1489 = vmatprep.subr.mxu0 0.0
    %1490 = vmatpush1.xpose.msra.mxu0 0.0
    %1491 = vmatprep.subr.mxu0 0.0
    %1492 = vmatpush1.xpose.msra.mxu0 0.0
    %1493 = vmatprep.subr.mxu0 0.0
    %1494 = vmatpush1.xpose.msra.mxu0 0.0
    %1495 = vmatprep.subr.mxu0 0.0
    %1496 = vmatpush1.xpose.msra.mxu0 0.0
    %1497 = vmatprep.mubr.f32.mxu0 0.0
    %1498 = vmatmul.mubr.f32.gmra.mrb[0].mxu0 %v1429
    %v1499 = vpop.f32.mrb[0].mxu0
    %v1500 = vadd.f32 0.0, %v1499
    %v1501 = vpop.f32.mrb[0].mxu0
    %1502 = vdwg.mxu0
    %v1503 = vsel %vm340, %v1422, -inf
    %1504 = vmax.xlane.f32.xlu0 %v1503
    %v1505 = vpop.xlane.xlu0 %1504
    %v1506 = vsel %vm340, %v1500, -inf
    %1507 = vmax.xlane.f32.xlu0 %v1506
    %v1508 = vpop.xlane.xlu0 %1507
    %v1509 = vsub.f32 %v1422, %v1505
    %v1510 = vsub.f32 %v1500, %v1508
    %v1511 = vmul.f32 %v1509, 1.442695
    %v1512 = vpow.pop %v1511
    %v1513 = vmul.f32 %v1510, 1.442695
    %v1514 = vpow.pop %v1513
    %v1515 = vsel %vm340, %v1512, 0.0
    %1516 = vadd.xlane.f32.xlu0 %v1515
    %v1517 = vpop.xlane.xlu0 %1516
    %v1518 = vsel %vm340, %v1514, 0.0
    %1519 = vadd.xlane.f32.xlu0 %v1518
    %v1520 = vpop.xlane.xlu0 %1519
    %v1521 = vrcp.pop %v1517
    %v1522 = vrcp.pop %v1520
    %v1523 = vmul.f32 %v1512, %v1521
    %v1524 = vmul.f32 %v1514, %v1522
    %1525 = vrot.lane.b32.xlu0 %v330, 104
    %v1526 = vpop.permute.xlu0 %1525
    %v1529 = vsel %vm340, %v1523, 0
    %1531 = vmatprep.subr.mxu0 0.0
    %1532 = vmatpush1.msra.mxu0 %v1526
    %1533 = vmatprep.subr.mxu0 0.0
    %1534 = vmatpush1.msra.mxu0 0.0
    %1535 = vmatprep.subr.mxu0 0.0
    %1536 = vmatpush1.msra.mxu0 0.0
    %1537 = vmatprep.subr.mxu0 0.0
    %1538 = vmatpush1.msra.mxu0 0.0
    %1539 = vmatprep.subr.mxu0 0.0
    %1540 = vmatpush1.msra.mxu0 0.0
    %1541 = vmatprep.subr.mxu0 0.0
    %1542 = vmatpush1.msra.mxu0 0.0
    %1543 = vmatprep.subr.mxu0 0.0
    %1544 = vmatpush1.msra.mxu0 0.0
    %1545 = vmatprep.subr.mxu0 0.0
    %1546 = vmatpush1.msra.mxu0 0.0
    %1547 = vmatprep.subr.mxu0 0.0
    %1548 = vmatpush1.msra.mxu0 0.0
    %1549 = vmatprep.subr.mxu0 0.0
    %1550 = vmatpush1.msra.mxu0 0.0
    %1551 = vmatprep.subr.mxu0 0.0
    %1552 = vmatpush1.msra.mxu0 0.0
    %1553 = vmatprep.subr.mxu0 0.0
    %1554 = vmatpush1.msra.mxu0 0.0
    %1555 = vmatprep.subr.mxu0 0.0
    %1556 = vmatpush1.msra.mxu0 0.0
    %1557 = vmatprep.subr.mxu0 0.0
    %1558 = vmatpush1.msra.mxu0 0.0
    %1559 = vmatprep.subr.mxu0 0.0
    %1560 = vmatpush1.msra.mxu0 0.0
    %1561 = vmatprep.subr.mxu0 0.0
    %1562 = vmatpush1.msra.mxu0 0.0
    %1563 = vmatprep.subr.mxu0 0.0
    %1564 = vmatpush1.msra.mxu0 0.0
    %1565 = vmatprep.subr.mxu0 0.0
    %1566 = vmatpush1.msra.mxu0 0.0
    %1567 = vmatprep.subr.mxu0 0.0
    %1568 = vmatpush1.msra.mxu0 0.0
    %1569 = vmatprep.subr.mxu0 0.0
    %1570 = vmatpush1.msra.mxu0 0.0
    %1571 = vmatprep.subr.mxu0 0.0
    %1572 = vmatpush1.msra.mxu0 0.0
    %1573 = vmatprep.subr.mxu0 0.0
    %1574 = vmatpush1.msra.mxu0 0.0
    %1575 = vmatprep.subr.mxu0 0.0
    %1576 = vmatpush1.msra.mxu0 0.0
    %1577 = vmatprep.subr.mxu0 0.0
    %1578 = vmatpush1.msra.mxu0 0.0
    %1579 = vmatprep.subr.mxu0 0.0
    %1580 = vmatpush1.msra.mxu0 0.0
    %1581 = vmatprep.subr.mxu0 0.0
    %1582 = vmatpush1.msra.mxu0 0.0
    %1583 = vmatprep.subr.mxu0 0.0
    %1584 = vmatpush1.msra.mxu0 0.0
    %1585 = vmatprep.subr.mxu0 0.0
    %1586 = vmatpush1.msra.mxu0 0.0
    %1587 = vmatprep.subr.mxu0 0.0
    %1588 = vmatpush1.msra.mxu0 0.0
    %1589 = vmatprep.subr.mxu0 0.0
    %1590 = vmatpush1.msra.mxu0 0.0
    %1591 = vmatprep.subr.mxu0 0.0
    %1592 = vmatpush1.msra.mxu0 0.0
    %1593 = vmatprep.subr.mxu0 0.0
    %1594 = vmatpush1.msra.mxu0 0.0
    %1595 = vmatprep.mubr.f32.mxu0 0.0
    %1596 = vmatmul.mubr.f32.gmra.mrb[0].mxu0 %v1529
    %v1597 = vpop.f32.mrb[0].mxu0
    %v1598 = vadd.f32 0.0, %v1597
    %v1599 = vpop.f32.mrb[0].mxu0
    %1600 = vdwg.mxu0
    %1601 = vrot.lane.b32.xlu0 %v335, 104
    %v1602 = vpop.permute.xlu0 %1601
    %v1605 = vsel %vm340, %v1524, 0
    %1607 = vmatprep.subr.mxu0 0.0
    %1608 = vmatpush1.msra.mxu0 %v1602
    %1609 = vmatprep.subr.mxu0 0.0
    %1610 = vmatpush1.msra.mxu0 0.0
    %1611 = vmatprep.subr.mxu0 0.0
    %1612 = vmatpush1.msra.mxu0 0.0
    %1613 = vmatprep.subr.mxu0 0.0
    %1614 = vmatpush1.msra.mxu0 0.0
    %1615 = vmatprep.subr.mxu0 0.0
    %1616 = vmatpush1.msra.mxu0 0.0
    %1617 = vmatprep.subr.mxu0 0.0
    %1618 = vmatpush1.msra.mxu0 0.0
    %1619 = vmatprep.subr.mxu0 0.0
    %1620 = vmatpush1.msra.mxu0 0.0
    %1621 = vmatprep.subr.mxu0 0.0
    %1622 = vmatpush1.msra.mxu0 0.0
    %1623 = vmatprep.subr.mxu0 0.0
    %1624 = vmatpush1.msra.mxu0 0.0
    %1625 = vmatprep.subr.mxu0 0.0
    %1626 = vmatpush1.msra.mxu0 0.0
    %1627 = vmatprep.subr.mxu0 0.0
    %1628 = vmatpush1.msra.mxu0 0.0
    %1629 = vmatprep.subr.mxu0 0.0
    %1630 = vmatpush1.msra.mxu0 0.0
    %1631 = vmatprep.subr.mxu0 0.0
    %1632 = vmatpush1.msra.mxu0 0.0
    %1633 = vmatprep.subr.mxu0 0.0
    %1634 = vmatpush1.msra.mxu0 0.0
    %1635 = vmatprep.subr.mxu0 0.0
    %1636 = vmatpush1.msra.mxu0 0.0
    %1637 = vmatprep.subr.mxu0 0.0
    %1638 = vmatpush1.msra.mxu0 0.0
    %1639 = vmatprep.subr.mxu0 0.0
    %1640 = vmatpush1.msra.mxu0 0.0
    %1641 = vmatprep.subr.mxu0 0.0
    %1642 = vmatpush1.msra.mxu0 0.0
    %1643 = vmatprep.subr.mxu0 0.0
    %1644 = vmatpush1.msra.mxu0 0.0
    %1645 = vmatprep.subr.mxu0 0.0
    %1646 = vmatpush1.msra.mxu0 0.0
    %1647 = vmatprep.subr.mxu0 0.0
    %1648 = vmatpush1.msra.mxu0 0.0
    %1649 = vmatprep.subr.mxu0 0.0
    %1650 = vmatpush1.msra.mxu0 0.0
    %1651 = vmatprep.subr.mxu0 0.0
    %1652 = vmatpush1.msra.mxu0 0.0
    %1653 = vmatprep.subr.mxu0 0.0
    %1654 = vmatpush1.msra.mxu0 0.0
    %1655 = vmatprep.subr.mxu0 0.0
    %1656 = vmatpush1.msra.mxu0 0.0
    %1657 = vmatprep.subr.mxu0 0.0
    %1658 = vmatpush1.msra.mxu0 0.0
    %1659 = vmatprep.subr.mxu0 0.0
    %1660 = vmatpush1.msra.mxu0 0.0
    %1661 = vmatprep.subr.mxu0 0.0
    %1662 = vmatpush1.msra.mxu0 0.0
    %1663 = vmatprep.subr.mxu0 0.0
    %1664 = vmatpush1.msra.mxu0 0.0
    %1665 = vmatprep.subr.mxu0 0.0
    %1666 = vmatpush1.msra.mxu0 0.0
    %1667 = vmatprep.subr.mxu0 0.0
    %1668 = vmatpush1.msra.mxu0 0.0
    %1669 = vmatprep.subr.mxu0 0.0
    %1670 = vmatpush1.msra.mxu0 0.0
    %1671 = vmatprep.mubr.f32.mxu0 0.0
    %1672 = vmatmul.mubr.f32.gmra.mrb[0].mxu0 %v1605
    %v1673 = vpop.f32.mrb[0].mxu0
    %v1674 = vadd.f32 0.0, %v1673
    %v1675 = vpop.f32.mrb[0].mxu0
    %1676 = vdwg.mxu0
    %1679 = vrot.lane.b32.xlu0 %v1598, 24
    %v1680 = vpop.permute.xlu0 %1679
    %1681 = vrot.lane.b32.xlu0 %v1674, 24
    %v1682 = vpop.permute.xlu0 %1681
    %vm1685 = vcmask 261312
    %1686 = vst.msk [vmem:[#allocation2] sm:$0xff] %vm1685, %v1680
    %1687 = vst.msk [vmem:[#allocation2 + $0x8] sm:$0xff] %vm1685, %v1682
    %v1688 = vld [vmem:[#allocation2] sm:$0xff]
    %v1689 = vld [vmem:[#allocation2 + $0x8] sm:$0xff]
    %v1690 = vld [vmem:[%s7] sm:$0xff]
    %v1691 = vld [vmem:[%s7 + $0x8] sm:$0xff]
    %v1692 = vld [vmem:[%s7 + $0x10] sm:$0xff]
    %v1693 = vld [vmem:[%s7 + $0x18] sm:$0xff]
    %v1694 = vld [vmem:[%s8] sm:$0x1]
    %v1696 = vlaneseq
    %v1697 = vshrl.u32 %v1696, 7
    %v1698 = vsub.s32 0, %v1697
    %v1699 = vrot.slane %v1694, %v1698
    %v1702 = vsel %vm84, %v1688, 0
    %v1705 = vsel %vm84, %v1689, 0
    %1707 = vmatprep.subr.mxu0 0.0
    %1708 = vmatpush1.msra.mxu0 %v1690
    %1709 = vmatprep.subr.mxu0 0.0
    %1710 = vmatpush1.msra.mxu0 %v1691
    %1711 = vmatprep.subr.mxu0 0.0
    %1712 = vmatpush1.msra.mxu0 %v1692
    %1713 = vmatprep.subr.mxu0 0.0
    %1714 = vmatpush1.msra.mxu0 %v1693
    %1715 = vmatprep.subr.mxu0 0.0
    %1716 = vmatpush1.msra.mxu0 0.0
    %1717 = vmatprep.subr.mxu0 0.0
    %1718 = vmatpush1.msra.mxu0 0.0
    %1719 = vmatprep.subr.mxu0 0.0
    %1720 = vmatpush1.msra.mxu0 0.0
    %1721 = vmatprep.subr.mxu0 0.0
    %1722 = vmatpush1.msra.mxu0 0.0
    %1723 = vmatprep.subr.mxu0 0.0
    %1724 = vmatpush1.msra.mxu0 0.0
    %1725 = vmatprep.subr.mxu0 0.0
    %1726 = vmatpush1.msra.mxu0 0.0
    %1727 = vmatprep.subr.mxu0 0.0
    %1728 = vmatpush1.msra.mxu0 0.0
    %1729 = vmatprep.subr.mxu0 0.0
    %1730 = vmatpush1.msra.mxu0 0.0
    %1731 = vmatprep.subr.mxu0 0.0
    %1732 = vmatpush1.msra.mxu0 0.0
    %1733 = vmatprep.subr.mxu0 0.0
    %1734 = vmatpush1.msra.mxu0 0.0
    %1735 = vmatprep.subr.mxu0 0.0
    %1736 = vmatpush1.msra.mxu0 0.0
    %1737 = vmatprep.subr.mxu0 0.0
    %1738 = vmatpush1.msra.mxu0 0.0
    %1739 = vmatprep.subr.mxu0 0.0
    %1740 = vmatpush1.msra.mxu0 0.0
    %1741 = vmatprep.subr.mxu0 0.0
    %1742 = vmatpush1.msra.mxu0 0.0
    %1743 = vmatprep.subr.mxu0 0.0
    %1744 = vmatpush1.msra.mxu0 0.0
    %1745 = vmatprep.subr.mxu0 0.0
    %1746 = vmatpush1.msra.mxu0 0.0
    %1747 = vmatprep.subr.mxu0 0.0
    %1748 = vmatpush1.msra.mxu0 0.0
    %1749 = vmatprep.subr.mxu0 0.0
    %1750 = vmatpush1.msra.mxu0 0.0
    %1751 = vmatprep.subr.mxu0 0.0
    %1752 = vmatpush1.msra.mxu0 0.0
    %1753 = vmatprep.subr.mxu0 0.0
    %1754 = vmatpush1.msra.mxu0 0.0
    %1755 = vmatprep.subr.mxu0 0.0
    %1756 = vmatpush1.msra.mxu0 0.0
    %1757 = vmatprep.subr.mxu0 0.0
    %1758 = vmatpush1.msra.mxu0 0.0
    %1759 = vmatprep.subr.mxu0 0.0
    %1760 = vmatpush1.msra.mxu0 0.0
    %1761 = vmatprep.subr.mxu0 0.0
    %1762 = vmatpush1.msra.mxu0 0.0
    %1763 = vmatprep.subr.mxu0 0.0
    %1764 = vmatpush1.msra.mxu0 0.0
    %1765 = vmatprep.subr.mxu0 0.0
    %1766 = vmatpush1.msra.mxu0 0.0
    %1767 = vmatprep.subr.mxu0 0.0
    %1768 = vmatpush1.msra.mxu0 0.0
    %1769 = vmatprep.subr.mxu0 0.0
    %1770 = vmatpush1.msra.mxu0 0.0
    %1771 = vmatprep.mubr.f32.mxu0 0.0
    %1772 = vmatmul.mubr.f32.gmra.mrb[0].mxu0 %v1702
    %v1773 = vpop.f32.mrb[0].mxu0
    %v1774 = vadd.f32 %v1699, %v1773
    %v1775 = vpop.f32.mrb[0].mxu0
    %1776 = vmatprep.mubr.f32.mxu0 0.0
    %1777 = vmatmul.mubr.f32.gmra.mrb[0].mxu0 %v1705
    %v1778 = vpop.f32.mrb[0].mxu0
    %v1779 = vadd.f32 %v1699, %v1778
    %v1780 = vpop.f32.mrb[0].mxu0
    %1781 = vdwg.mxu0
    %v1782 = vadd.f32 %v1774, %v71
    %v1783 = vadd.f32 %v1779, %v72
    %v1784 = vsel %vm84, %v1782, 0.0
    %1785 = vadd.xlane.f32.xlu0 %v1784
    %v1786 = vpop.xlane.xlu0 %1785
    %v1787 = vsel %vm84, %v1783, 0.0
    %1788 = vadd.xlane.f32.xlu0 %v1787
    %v1789 = vpop.xlane.xlu0 %1788
    %v1790 = vrcp.pop 32.0
    %v1791 = vmul.f32 %v1786, %v1790
    %v1792 = vmul.f32 %v1789, %v1790
    %v1793 = vmul.f32 %v1782, %v1782
    %v1794 = vmul.f32 %v1783, %v1783
    %v1795 = vsel %vm84, %v1793, 0.0
    %1796 = vadd.xlane.f32.xlu0 %v1795
    %v1797 = vpop.xlane.xlu0 %1796
    %v1798 = vsel %vm84, %v1794, 0.0
    %1799 = vadd.xlane.f32.xlu0 %v1798
    %v1800 = vpop.xlane.xlu0 %1799
    %v1801 = vmul.f32 %v1797, %v1790
    %v1802 = vmul.f32 %v1800, %v1790
    %v1803 = vmul.f32 %v1791, %v1791
    %v1804 = vmul.f32 %v1792, %v1792
    %v1805 = vsub.f32 %v1801, %v1803
    %v1806 = vsub.f32 %v1802, %v1804
    %v1807 = vsub.f32 %v1782, %v1791
    %v1808 = vsub.f32 %v1783, %v1792
    %v1809 = vadd.f32 %v1805, 1e-05
    %v1810 = vadd.f32 %v1806, 1e-05
    %v1811 = vrsqrt.pop %v1809
    %v1812 = vrsqrt.pop %v1810
    %v1813 = vmul.f32 %v1807, %v1811
    %v1814 = vmul.f32 %v1808, %v1812
    %v1815 = vld [vmem:[%s9] sm:$0x1]
    %v1817 = vlaneseq
    %v1818 = vshrl.u32 %v1817, 7
    %v1819 = vsub.s32 0, %v1818
    %v1820 = vrot.slane %v1815, %v1819
    %v1822 = vmul.f32 %v1813, %v1820
    %v1823 = vmul.f32 %v1814, %v1820
    %v1824 = vld [vmem:[%s10] sm:$0x1]
    %v1826 = vlaneseq
    %v1827 = vshrl.u32 %v1826, 7
    %v1828 = vsub.s32 0, %v1827
    %v1829 = vrot.slane %v1824, %v1828
    %v1831 = vadd.f32 %v1822, %v1829
    %v1832 = vadd.f32 %v1823, %v1829
    %v1833 = vld [vmem:[%s11] sm:$0xff]
    %v1834 = vld [vmem:[%s11 + $0x8] sm:$0xff]
    %v1835 = vld [vmem:[%s11 + $0x10] sm:$0xff]
    %v1836 = vld [vmem:[%s11 + $0x18] sm:$0xff]
    %v1837 = vld [vmem:[%s12] sm:$0x1]
    %v1839 = vlaneseq
    %v1840 = vshrl.u32 %v1839, 7
    %v1841 = vsub.s32 0, %v1840
    %v1842 = vrot.slane %v1837, %v1841
    %v1845 = vsel %vm84, %v1831, 0
    %v1848 = vsel %vm84, %v1832, 0
    %1850 = vmatprep.subr.mxu0 0.0
    %1851 = vmatpush1.msra.mxu0 %v1833
    %1852 = vmatprep.subr.mxu0 0.0
    %1853 = vmatpush1.msra.mxu0 %v1834
    %1854 = vmatprep.subr.mxu0 0.0
    %1855 = vmatpush1.msra.mxu0 %v1835
    %1856 = vmatprep.subr.mxu0 0.0
    %1857 = vmatpush1.msra.mxu0 %v1836
    %1858 = vmatprep.subr.mxu0 0.0
    %1859 = vmatpush1.msra.mxu0 0.0
    %1860 = vmatprep.subr.mxu0 0.0
    %1861 = vmatpush1.msra.mxu0 0.0
    %1862 = vmatprep.subr.mxu0 0.0
    %1863 = vmatpush1.msra.mxu0 0.0
    %1864 = vmatprep.subr.mxu0 0.0
    %1865 = vmatpush1.msra.mxu0 0.0
    %1866 = vmatprep.subr.mxu0 0.0
    %1867 = vmatpush1.msra.mxu0 0.0
    %1868 = vmatprep.subr.mxu0 0.0
    %1869 = vmatpush1.msra.mxu0 0.0
    %1870 = vmatprep.subr.mxu0 0.0
    %1871 = vmatpush1.msra.mxu0 0.0
    %1872 = vmatprep.subr.mxu0 0.0
    %1873 = vmatpush1.msra.mxu0 0.0
    %1874 = vmatprep.subr.mxu0 0.0
    %1875 = vmatpush1.msra.mxu0 0.0
    %1876 = vmatprep.subr.mxu0 0.0
    %1877 = vmatpush1.msra.mxu0 0.0
    %1878 = vmatprep.subr.mxu0 0.0
    %1879 = vmatpush1.msra.mxu0 0.0
    %1880 = vmatprep.subr.mxu0 0.0
    %1881 = vmatpush1.msra.mxu0 0.0
    %1882 = vmatprep.subr.mxu0 0.0
    %1883 = vmatpush1.msra.mxu0 0.0
    %1884 = vmatprep.subr.mxu0 0.0
    %1885 = vmatpush1.msra.mxu0 0.0
    %1886 = vmatprep.subr.mxu0 0.0
    %1887 = vmatpush1.msra.mxu0 0.0
    %1888 = vmatprep.subr.mxu0 0.0
    %1889 = vmatpush1.msra.mxu0 0.0
    %1890 = vmatprep.subr.mxu0 0.0
    %1891 = vmatpush1.msra.mxu0 0.0
    %1892 = vmatprep.subr.mxu0 0.0
    %1893 = vmatpush1.msra.mxu0 0.0
    %1894 = vmatprep.subr.mxu0 0.0
    %1895 = vmatpush1.msra.mxu0 0.0
    %1896 = vmatprep.subr.mxu0 0.0
    %1897 = vmatpush1.msra.mxu0 0.0
    %1898 = vmatprep.subr.mxu0 0.0
    %1899 = vmatpush1.msra.mxu0 0.0
    %1900 = vmatprep.subr.mxu0 0.0
    %1901 = vmatpush1.msra.mxu0 0.0
    %1902 = vmatprep.subr.mxu0 0.0
    %1903 = vmatpush1.msra.mxu0 0.0
    %1904 = vmatprep.subr.mxu0 0.0
    %1905 = vmatpush1.msra.mxu0 0.0
    %1906 = vmatprep.subr.mxu0 0.0
    %1907 = vmatpush1.msra.mxu0 0.0
    %1908 = vmatprep.subr.mxu0 0.0
    %1909 = vmatpush1.msra.mxu0 0.0
    %1910 = vmatprep.subr.mxu0 0.0
    %1911 = vmatpush1.msra.mxu0 0.0
    %1912 = vmatprep.subr.mxu0 0.0
    %1913 = vmatpush1.msra.mxu0 0.0
    %1914 = vmatprep.mubr.f32.mxu0 0.0
    %1915 = vmatmul.mubr.f32.gmra.mrb[0].mxu0 %v1845
    %v1916 = vpop.f32.mrb[0].mxu0
    %v1917 = vadd.f32 %v1842, %v1916
    %v1918 = vpop.f32.mrb[0].mxu0
    %1919 = vmatprep.mubr.f32.mxu0 0.0
    %1920 = vmatmul.mubr.f32.gmra.mrb[0].mxu0 %v1848
    %v1921 = vpop.f32.mrb[0].mxu0
    %v1922 = vadd.f32 %v1842, %v1921
    %v1923 = vpop.f32.mrb[0].mxu0
    %1924 = vdwg.mxu0
    %v1925 = vmul.f32 %v1917, 0.5
    %v1926 = vmul.f32 %v1922, 0.5
    %v1927 = vmul.f32 %v1917, 0.70710677
    %v1928 = vmul.f32 %v1922, 0.70710677
    %v1929 = verf.f32.pop %v1927
    %v1930 = verf.f32.pop %v1928
    %v1931 = vadd.f32 %v1929, 1.0
    %v1932 = vadd.f32 %v1930, 1.0
    %v1933 = vmul.f32 %v1925, %v1931
    %v1934 = vmul.f32 %v1926, %v1932
    %v1935 = vld [vmem:[%s13] sm:$0xff]
    %v1936 = vld [vmem:[%s13 + $0x8] sm:$0xff]
    %v1937 = vld [vmem:[%s13 + $0x10] sm:$0xff]
    %v1938 = vld [vmem:[%s13 + $0x18] sm:$0xff]
    %v1939 = vld [vmem:[%s13 + $0x20] sm:$0xff]
    %v1940 = vld [vmem:[%s13 + $0x28] sm:$0xff]
    %v1941 = vld [vmem:[%s13 + $0x30] sm:$0xff]
    %v1942 = vld [vmem:[%s13 + $0x38] sm:$0xff]
    %v1943 = vld [vmem:[%s13 + $0x40] sm:$0xff]
    %v1944 = vld [vmem:[%s13 + $0x48] sm:$0xff]
    %v1945 = vld [vmem:[%s13 + $0x50] sm:$0xff]
    %v1946 = vld [vmem:[%s13 + $0x58] sm:$0xff]
    %v1947 = vld [vmem:[%s13 + $0x60] sm:$0xff]
    %v1948 = vld [vmem:[%s13 + $0x68] sm:$0xff]
    %v1949 = vld [vmem:[%s13 + $0x70] sm:$0xff]
    %v1950 = vld [vmem:[%s13 + $0x78] sm:$0xff]
    %v1951 = vld [vmem:[%s14] sm:$0x1]
    %v1953 = vlaneseq
    %v1954 = vshrl.u32 %v1953, 7
    %v1955 = vsub.s32 0, %v1954
    %v1956 = vrot.slane %v1951, %v1955
    %1958 = vmatprep.subr.mxu0 0.0
    %1959 = vmatpush1.msra.mxu0 %v1935
    %1960 = vmatprep.subr.mxu0 0.0
    %1961 = vmatpush1.msra.mxu0 %v1936
    %1962 = vmatprep.subr.mxu0 0.0
    %1963 = vmatpush1.msra.mxu0 %v1937
    %1964 = vmatprep.subr.mxu0 0.0
    %1965 = vmatpush1.msra.mxu0 %v1938
    %1966 = vmatprep.subr.mxu0 0.0
    %1967 = vmatpush1.msra.mxu0 %v1939
    %1968 = vmatprep.subr.mxu0 0.0
    %1969 = vmatpush1.msra.mxu0 %v1940
    %1970 = vmatprep.subr.mxu0 0.0
    %1971 = vmatpush1.msra.mxu0 %v1941
    %1972 = vmatprep.subr.mxu0 0.0
    %1973 = vmatpush1.msra.mxu0 %v1942
    %1974 = vmatprep.subr.mxu0 0.0
    %1975 = vmatpush1.msra.mxu0 %v1943
    %1976 = vmatprep.subr.mxu0 0.0
    %1977 = vmatpush1.msra.mxu0 %v1944
    %1978 = vmatprep.subr.mxu0 0.0
    %1979 = vmatpush1.msra.mxu0 %v1945
    %1980 = vmatprep.subr.mxu0 0.0
    %1981 = vmatpush1.msra.mxu0 %v1946
    %1982 = vmatprep.subr.mxu0 0.0
    %1983 = vmatpush1.msra.mxu0 %v1947
    %1984 = vmatprep.subr.mxu0 0.0
    %1985 = vmatpush1.msra.mxu0 %v1948
    %1986 = vmatprep.subr.mxu0 0.0
    %1987 = vmatpush1.msra.mxu0 %v1949
    %1988 = vmatprep.subr.mxu0 0.0
    %1989 = vmatpush1.msra.mxu0 %v1950
    %1990 = vmatprep.subr.mxu0 0.0
    %1991 = vmatpush1.msra.mxu0 0.0
    %1992 = vmatprep.subr.mxu0 0.0
    %1993 = vmatpush1.msra.mxu0 0.0
    %1994 = vmatprep.subr.mxu0 0.0
    %1995 = vmatpush1.msra.mxu0 0.0
    %1996 = vmatprep.subr.mxu0 0.0
    %1997 = vmatpush1.msra.mxu0 0.0
    %1998 = vmatprep.subr.mxu0 0.0
    %1999 = vmatpush1.msra.mxu0 0.0
    %2000 = vmatprep.subr.mxu0 0.0
    %2001 = vmatpush1.msra.mxu0 0.0
    %2002 = vmatprep.subr.mxu0 0.0
    %2003 = vmatpush1.msra.mxu0 0.0
    %2004 = vmatprep.subr.mxu0 0.0
    %2005 = vmatpush1.msra.mxu0 0.0
    %2006 = vmatprep.subr.mxu0 0.0
    %2007 = vmatpush1.msra.mxu0 0.0
    %2008 = vmatprep.subr.mxu0 0.0
    %2009 = vmatpush1.msra.mxu0 0.0
    %2010 = vmatprep.subr.mxu0 0.0
    %2011 = vmatpush1.msra.mxu0 0.0
    %2012 = vmatprep.subr.mxu0 0.0
    %2013 = vmatpush1.msra.mxu0 0.0
    %2014 = vmatprep.subr.mxu0 0.0
    %2015 = vmatpush1.msra.mxu0 0.0
    %2016 = vmatprep.subr.mxu0 0.0
    %2017 = vmatpush1.msra.mxu0 0.0
    %2018 = vmatprep.subr.mxu0 0.0
    %2019 = vmatpush1.msra.mxu0 0.0
    %2020 = vmatprep.subr.mxu0 0.0
    %2021 = vmatpush1.msra.mxu0 0.0
    %2022 = vmatprep.mubr.f32.mxu0 0.0
    %2023 = vmatmul.mubr.f32.gmra.mrb[0].mxu0 %v1933
    %v2024 = vpop.f32.mrb[0].mxu0
    %v2025 = vadd.f32 %v1956, %v2024
    %v2026 = vpop.f32.mrb[0].mxu0
    %2027 = vmatprep.mubr.f32.mxu0 0.0
    %2028 = vmatmul.mubr.f32.gmra.mrb[0].mxu0 %v1934
    %v2029 = vpop.f32.mrb[0].mxu0
    %v2030 = vadd.f32 %v1956, %v2029
    %v2031 = vpop.f32.mrb[0].mxu0
    %2032 = vdwg.mxu0
    %v2033 = vadd.f32 %v2025, %v1831
    %v2034 = vadd.f32 %v2030, %v1832
    %v2035 = vsel %vm84, %v2033, 0.0
    %2036 = vadd.xlane.f32.xlu0 %v2035
    %v2037 = vpop.xlane.xlu0 %2036
    %v2038 = vsel %vm84, %v2034, 0.0
    %2039 = vadd.xlane.f32.xlu0 %v2038
    %v2040 = vpop.xlane.xlu0 %2039
    %v2041 = vmul.f32 %v2037, %v1790
    %v2042 = vmul.f32 %v2040, %v1790
    %v2043 = vmul.f32 %v2033, %v2033
    %v2044 = vmul.f32 %v2034, %v2034
    %v2045 = vsel %vm84, %v2043, 0.0
    %2046 = vadd.xlane.f32.xlu0 %v2045
    %v2047 = vpop.xlane.xlu0 %2046
    %v2048 = vsel %vm84, %v2044, 0.0
    %2049 = vadd.xlane.f32.xlu0 %v2048
    %v2050 = vpop.xlane.xlu0 %2049
    %v2051 = vmul.f32 %v2047, %v1790
    %v2052 = vmul.f32 %v2050, %v1790
    %v2053 = vmul.f32 %v2041, %v2041
    %v2054 = vmul.f32 %v2042, %v2042
    %v2055 = vsub.f32 %v2051, %v2053
    %v2056 = vsub.f32 %v2052, %v2054
    %v2057 = vsub.f32 %v2033, %v2041
    %v2058 = vsub.f32 %v2034, %v2042
    %v2059 = vadd.f32 %v2055, 1e-05
    %v2060 = vadd.f32 %v2056, 1e-05
    %v2061 = vrsqrt.pop %v2059
    %v2062 = vrsqrt.pop %v2060
    %v2063 = vmul.f32 %v2057, %v2061
    %v2064 = vmul.f32 %v2058, %v2062
    %v2065 = vld [vmem:[%s15] sm:$0x1]
    %v2067 = vlaneseq
    %v2068 = vshrl.u32 %v2067, 7
    %v2069 = vsub.s32 0, %v2068
    %v2070 = vrot.slane %v2065, %v2069
    %v2072 = vmul.f32 %v2063, %v2070
    %v2073 = vmul.f32 %v2064, %v2070
    %v2074 = vld [vmem:[%s16] sm:$0x1]
    %v2076 = vlaneseq
    %v2077 = vshrl.u32 %v2076, 7
    %v2078 = vsub.s32 0, %v2077
    %v2079 = vrot.slane %v2074, %v2078
    %v2081 = vadd.f32 %v2072, %v2079
    %v2082 = vadd.f32 %v2073, %v2079
    %2083 = vst.msk [vmem:[#allocation6] sm:$0xff] %vm84, %v2081
    %2084 = vst.msk [vmem:[#allocation6 + $0x8] sm:$0xff] %vm84, %v2082
    // Predicated region
    $region74: #{tpu_custom_call.1} parent=1 // pred_check
      _
    $region75: #{tpu_custom_call.1} parent=1 // pred_check_branch
      %2086 = sbr.rel (0) target = $region77
    $region76: #{tpu_custom_call.1} parent=1 // pred_region
      %s2088 = ssub.s32 256, 256
      %2089 = vsyncadd [#allocation5], %s2088
      %s2090 = sshll.u32 [#allocation6], 4
      %s2091 = int_to_ptr.vmem [resolvable:$true] %s2090
      %2096 = dma.vmem_to_hbm [thread:$0]  %s2091, 256, %s17, [#allocation5], 128, 128, 8
    $region77: #{tpu_custom_call.1} parent=1 // pred_fallthru
      _
    // Predicated region
    $region78: #{tpu_custom_call.1} parent=1 // pred_check
      _
    $region79: #{tpu_custom_call.1} parent=1 // pred_check_branch
      %2098 = sbr.rel (0) target = $region81
    $region80: #{tpu_custom_call.1} parent=1 // pred_region
      %2099 = dma.done [#allocation5], 256
    $region81: #{tpu_custom_call.1} parent=1 // pred_fallthru
      _
    %2100 = vsyncpa [#allocation4], 1
    %2101 = vsyncpa [#allocation5], 1

</llo_original>
